<compile_context>
chip_gen: v6e
topology: v6e:2x2x1
jax: 0.10.0
libtpu: 0.0.40
codegen_flags: <defaults>
</compile_context>

<pallas_src>
import jax
import jax.numpy as jnp
from jax.experimental import pallas as pl
from jax.experimental.pallas import tpu as pltpu

HIDDEN = 640
MID = 320
EPS_BN = 1e-5
LANE = 128


def autoencoder2_kernel(x_ref, w1, b1, w2, w3, b_out, o_ref):
    # x is already bf16 (cast in the wrapper).
    x = x_ref[...]

    # encoder: (BN1 folded) Linear + ReLU  -- bf16 MXU, f32 accumulate.
    enc = jnp.dot(x, w1[...], preferred_element_type=jnp.float32) + b1[...]
    enc = jnp.maximum(enc, 0.0)

    # Fully collapsed remainder of the network:
    #   out = enc @ W2 + x @ W3 + b      (W2/W3/b precomputed exactly in f32)
    out = (jnp.dot(enc.astype(jnp.bfloat16), w2[...],
                   preferred_element_type=jnp.float32)
           + jnp.dot(x, w3[...], preferred_element_type=jnp.float32)
           + b_out[...])
    o_ref[...] = out.astype(o_ref.dtype)


def _pick_tile_b(B):
    """Batch-adaptive tile size (multiple of 8 sublanes)."""
    b_round = max(8, -(-B // 8) * 8)
    if b_round <= 128:
        return b_round                       # one small tile
    if b_round <= 1024:
        # two tiles so both v7x TensorCores get work; negligible extra cost
        # on single-TC v5e/v6e (~0.35 us per extra grid step).
        return -(-(b_round // 2) // 8) * 8
    return 512                               # large batches: ~85% HBM roofline


def autoencoder2_forward(x, params, *, tile_b=None):
    B, D_in = x.shape
    D_out = params["w_l3"].shape[1]
    f32, bf16 = jnp.float32, jnp.bfloat16

    # ---------- exact f32 algebraic prep (before any bf16 cast) ----------
    # BatchNorm1d(input_size) eval stats folded into the encoder Linear.
    s1 = params["bn1_g"] / jnp.sqrt(params["bn1_v"] + EPS_BN)           # (1, in)
    sh1 = params["bn1_b"] - params["bn1_m"] * s1
    w1 = params["w_enc"] * s1.T                                         # (in, 640)
    b1 = sh1 @ params["w_enc"] + params["b_enc"]                        # (1, 640)

    # BatchNorm1d(640) eval stats folded into layer[0]; split concat halves.
    s2 = params["bn2_g"] / jnp.sqrt(params["bn2_v"] + EPS_BN)           # (1, 640)
    sh2 = params["bn2_b"] - params["bn2_m"] * s2
    w_l0d_s = params["w_l0"][:D_in] * s2                                # (in, 640)
    w_l0x_s = params["w_l0"][D_in:] * s2                                # (in, 640)
    b_l0_s = params["b_l0"] * s2 + sh2                                  # (1, 640)

    # Fuse the three trailing Linears (no nonlinearity between them in eval).
    w_tail = params["w_l1"] @ params["w_l2"] @ params["w_l3"]           # (640, out)
    b_tail = (params["b_l1"] @ params["w_l2"] + params["b_l2"]) @ params["w_l3"] \
             + params["b_l3"]                                           # (1, out)

    # Complete collapse through the decoder / concat:
    #   out = enc @ W2 + x @ W3 + b_out
    w2 = params["w_dec"] @ w_l0d_s @ w_tail                             # (640, out)
    w3 = w_l0x_s @ w_tail                                               # (in, out)
    b_out = (params["b_dec"] @ w_l0d_s + b_l0_s) @ w_tail + b_tail      # (1, out)

    # Lane-dense output: pad to a multiple of 128 lanes, slice outside.
    D_out_pad = pl.cdiv(D_out, LANE) * LANE
    pad_o = D_out_pad - D_out
    w2 = jnp.pad(w2, ((0, 0), (0, pad_o)))
    w3 = jnp.pad(w3, ((0, 0), (0, pad_o)))
    b_out = jnp.pad(b_out, ((0, 0), (0, pad_o)))

    # bf16 weights for the MXU; biases stay f32 (added to the f32 accumulator).
    ordered = [
        w1.astype(bf16), b1.astype(f32),
        w2.astype(bf16), w3.astype(bf16), b_out.astype(f32),
    ]

    # Batch tiling (pad batch to a multiple of tile_b; x cast to bf16 here).
    if tile_b is None:
        tile_b = _pick_tile_b(B)
    B_pad = pl.cdiv(B, tile_b) * tile_b
    x_p = x.astype(bf16)
    if B_pad != B:
        x_p = jnp.pad(x_p, ((0, B_pad - B), (0, 0)))

    def full_spec(arr):
        # Whole array resident every grid step (constant index_map).
        return pl.BlockSpec(arr.shape, lambda i: (0,) * arr.ndim)

    in_specs = [pl.BlockSpec((tile_b, D_in), lambda i: (i, 0))]
    in_specs += [full_spec(a) for a in ordered]
    out_spec = pl.BlockSpec((tile_b, D_out_pad), lambda i: (i, 0))

    out = pl.pallas_call(
        autoencoder2_kernel,
        out_shape=jax.ShapeDtypeStruct((B_pad, D_out_pad), jnp.float32),
        grid_spec=pltpu.PrefetchScalarGridSpec(
            num_scalar_prefetch=0,
            grid=(B_pad // tile_b,),
            in_specs=in_specs,
            out_specs=out_spec,
        ),
        compiler_params=pltpu.CompilerParams(
            dimension_semantics=("parallel",),
        ),
    )(x_p, *ordered)

    return out[:B, :D_out]


def init_params(key, input_size, output_size):
    ks = jax.random.split(key, 20)
    f32 = jnp.float32
    scale = 0.02
    # BN stats are randomized (not fresh-init) so the folding is actually tested.
    return {
        "bn1_g": 1.0 + 0.1 * jax.random.normal(ks[0], (1, input_size), f32),
        "bn1_b": 0.1 * jax.random.normal(ks[1], (1, input_size), f32),
        "bn1_m": 0.1 * jax.random.normal(ks[2], (1, input_size), f32),
        "bn1_v": jax.random.uniform(ks[3], (1, input_size), f32, 0.5, 1.5),
        "w_enc": scale * jax.random.normal(ks[4], (input_size, HIDDEN), f32),
        "b_enc": scale * jax.random.normal(ks[5], (1, HIDDEN), f32),
        "w_dec": scale * jax.random.normal(ks[6], (HIDDEN, input_size), f32),
        "b_dec": scale * jax.random.normal(ks[7], (1, input_size), f32),
        "w_l0": scale * jax.random.normal(ks[8], (2 * input_size, HIDDEN), f32),
        "b_l0": scale * jax.random.normal(ks[9], (1, HIDDEN), f32),
        "bn2_g": 1.0 + 0.1 * jax.random.normal(ks[10], (1, HIDDEN), f32),
        "bn2_b": 0.1 * jax.random.normal(ks[11], (1, HIDDEN), f32),
        "bn2_m": 0.1 * jax.random.normal(ks[12], (1, HIDDEN), f32),
        "bn2_v": jax.random.uniform(ks[13], (1, HIDDEN), f32, 0.5, 1.5),
        "w_l1": scale * jax.random.normal(ks[14], (HIDDEN, MID), f32),
        "b_l1": scale * jax.random.normal(ks[15], (1, MID), f32),
        "w_l2": scale * jax.random.normal(ks[16], (MID, HIDDEN), f32),
        "b_l2": scale * jax.random.normal(ks[17], (1, HIDDEN), f32),
        "w_l3": scale * jax.random.normal(ks[18], (HIDDEN, output_size), f32),
        "b_l3": scale * jax.random.normal(ks[19], (1, output_size), f32),
    }


def reference_forward(x, p):
    """Pure-JAX f32 reference with the module's eval-mode structure."""
    xn = (x - p["bn1_m"]) / jnp.sqrt(p["bn1_v"] + EPS_BN) * p["bn1_g"] + p["bn1_b"]
    enc = jnp.maximum(xn @ p["w_enc"] + p["b_enc"], 0.0)
    dec = enc @ p["w_dec"] + p["b_dec"]
    cat = jnp.concatenate([dec, x], axis=1)
    h = cat @ p["w_l0"] + p["b_l0"]
    h = (h - p["bn2_m"]) / jnp.sqrt(p["bn2_v"] + EPS_BN) * p["bn2_g"] + p["bn2_b"]
    h = h @ p["w_l1"] + p["b_l1"]
    h = h @ p["w_l2"] + p["b_l2"]
    return h @ p["w_l3"] + p["b_l3"]


if __name__ == "__main__":
    key = jax.random.PRNGKey(0)
    k_x, k_p = jax.random.split(key)

    batch = 256          # auto tiling -> 2 tiles of 128 (both v7x TCs get work)
    input_size = 32
    output_size = 8

    x = jax.random.normal(k_x, (batch, input_size), jnp.float32)
    params = init_params(k_p, input_size, output_size)

    out = jax.block_until_ready(autoencoder2_forward(x, params))
    ref = reference_forward(x, params)

    assert out.shape == (batch, output_size)
    max_err = float(jnp.max(jnp.abs(out - ref)))
    assert jnp.allclose(out, ref, atol=1e-2, rtol=1e-2), f"mismatch, max|err|={max_err}"

    print("KERNEL_OK")
</pallas_src>

<mosaic_0001>
module attributes {stable_mosaic.version = 11 : i64} {
  func.func @autoencoder2_kernel(%arg0: i32, %arg1: memref<128x32xbf16, #tpu.memory_space<vmem>>, %arg2: memref<32x640xbf16, #tpu.memory_space<vmem>>, %arg3: memref<1x640xf32, #tpu.memory_space<vmem>>, %arg4: memref<640x128xbf16, #tpu.memory_space<vmem>>, %arg5: memref<32x128xbf16, #tpu.memory_space<vmem>>, %arg6: memref<1x128xf32, #tpu.memory_space<vmem>>, %arg7: memref<128x128xf32, #tpu.memory_space<vmem>>) attributes {dimension_semantics = [#tpu.dimension_semantics<parallel>], iteration_bounds = array<i64: 2>, scalar_prefetch = 0 : i64, scratch_operands = 0 : i64, tpu.core_type = #tpu.core_type<tc>, window_params = [{transform_indices = @transform_0, window_bounds = array<i64: 128, 32>}, {pipeline_mode = #tpu.pipeline_mode<synchronous>, transform_indices = @transform_1, window_bounds = array<i64: 32, 640>}, {pipeline_mode = #tpu.pipeline_mode<synchronous>, transform_indices = @transform_2, window_bounds = array<i64: 1, 640>}, {pipeline_mode = #tpu.pipeline_mode<synchronous>, transform_indices = @transform_3, window_bounds = array<i64: 640, 128>}, {pipeline_mode = #tpu.pipeline_mode<synchronous>, transform_indices = @transform_4, window_bounds = array<i64: 32, 128>}, {pipeline_mode = #tpu.pipeline_mode<synchronous>, transform_indices = @transform_5, window_bounds = array<i64: 1, 128>}, {transform_indices = @transform_6, window_bounds = array<i64: 128, 128>}]} {
    %c0 = arith.constant 0 : index
    %c0_0 = arith.constant 0 : index
    %0 = vector.load %arg1[%c0, %c0_0] : memref<128x32xbf16, #tpu.memory_space<vmem>>, vector<128x32xbf16>
    %c0_1 = arith.constant 0 : index
    %c0_2 = arith.constant 0 : index
    %1 = vector.load %arg2[%c0_1, %c0_2] : memref<32x640xbf16, #tpu.memory_space<vmem>>, vector<32x640xbf16>
    %cst = arith.constant dense<0.000000e+00> : vector<128x640xf32>
    %2 = tpu.matmul %0, %1, %cst {dimension_numbers = #tpu.dot_dimension_numbers<[1], [0], [0], [1], [0, 0, 1, 1], [], []>} : vector<128x32xbf16>, vector<32x640xbf16>, vector<128x640xf32> -> vector<128x640xf32>
    %c0_3 = arith.constant 0 : index
    %c0_4 = arith.constant 0 : index
    %3 = vector.load %arg3[%c0_3, %c0_4] : memref<1x640xf32, #tpu.memory_space<vmem>>, vector<1x640xf32>
    %4 = vector.broadcast %3 : vector<1x640xf32> to vector<128x640xf32>
    %5 = arith.addf %2, %4 : vector<128x640xf32>
    %cst_5 = arith.constant 0.000000e+00 : f32
    %6 = vector.broadcast %cst_5 : f32 to vector<128x640xf32>
    %7 = arith.maximumf %5, %6 : vector<128x640xf32>
    %8 = arith.truncf %7 : vector<128x640xf32> to vector<128x640xbf16>
    %c0_6 = arith.constant 0 : index
    %c0_7 = arith.constant 0 : index
    %9 = vector.load %arg4[%c0_6, %c0_7] : memref<640x128xbf16, #tpu.memory_space<vmem>>, vector<640x128xbf16>
    %cst_8 = arith.constant dense<0.000000e+00> : vector<128x128xf32>
    %10 = tpu.matmul %8, %9, %cst_8 {dimension_numbers = #tpu.dot_dimension_numbers<[1], [0], [0], [1], [0, 0, 1, 1], [], []>} : vector<128x640xbf16>, vector<640x128xbf16>, vector<128x128xf32> -> vector<128x128xf32>
    %c0_9 = arith.constant 0 : index
    %c0_10 = arith.constant 0 : index
    %11 = vector.load %arg5[%c0_9, %c0_10] : memref<32x128xbf16, #tpu.memory_space<vmem>>, vector<32x128xbf16>
    %cst_11 = arith.constant dense<0.000000e+00> : vector<128x128xf32>
    %12 = tpu.matmul %0, %11, %cst_11 {dimension_numbers = #tpu.dot_dimension_numbers<[1], [0], [0], [1], [0, 0, 1, 1], [], []>} : vector<128x32xbf16>, vector<32x128xbf16>, vector<128x128xf32> -> vector<128x128xf32>
    %13 = arith.addf %10, %12 : vector<128x128xf32>
    %c0_12 = arith.constant 0 : index
    %c0_13 = arith.constant 0 : index
    %14 = vector.load %arg6[%c0_12, %c0_13] : memref<1x128xf32, #tpu.memory_space<vmem>>, vector<1x128xf32>
    %15 = vector.broadcast %14 : vector<1x128xf32> to vector<128x128xf32>
    %16 = arith.addf %13, %15 : vector<128x128xf32>
    %c0_14 = arith.constant 0 : index
    %c0_15 = arith.constant 0 : index
    %17 = vector.load %arg7[%c0_14, %c0_15] : memref<128x128xf32, #tpu.memory_space<vmem>>, vector<128x128xf32>
    tpu.vector_store %arg7[%c0_14, %c0_15], %16 {strides = array<i32>} : memref<128x128xf32, #tpu.memory_space<vmem>>, vector<128x128xf32>,
    return
  }
  func.func @transform_0(%arg0: i32) -> (i32, i32) {
    %c0_i32 = arith.constant 0 : i32
    %c0_i32_0 = arith.constant 0 : i32
    return %arg0, %c0_i32 : i32, i32
  }
  func.func @transform_1(%arg0: i32) -> (i32, i32) {
    %c0_i32 = arith.constant 0 : i32
    %c0_i32_0 = arith.constant 0 : i32
    %c0_i32_1 = arith.constant 0 : i32
    return %c0_i32, %c0_i32_0 : i32, i32
  }
  func.func @transform_2(%arg0: i32) -> (i32, i32) {
    %c0_i32 = arith.constant 0 : i32
    %c0_i32_0 = arith.constant 0 : i32
    %c0_i32_1 = arith.constant 0 : i32
    return %c0_i32, %c0_i32_0 : i32, i32
  }
  func.func @transform_3(%arg0: i32) -> (i32, i32) {
    %c0_i32 = arith.constant 0 : i32
    %c0_i32_0 = arith.constant 0 : i32
    %c0_i32_1 = arith.constant 0 : i32
    return %c0_i32, %c0_i32_0 : i32, i32
  }
  func.func @transform_4(%arg0: i32) -> (i32, i32) {
    %c0_i32 = arith.constant 0 : i32
    %c0_i32_0 = arith.constant 0 : i32
    %c0_i32_1 = arith.constant 0 : i32
    return %c0_i32, %c0_i32_0 : i32, i32
  }
  func.func @transform_5(%arg0: i32) -> (i32, i32) {
    %c0_i32 = arith.constant 0 : i32
    %c0_i32_0 = arith.constant 0 : i32
    %c0_i32_1 = arith.constant 0 : i32
    return %c0_i32, %c0_i32_0 : i32, i32
  }
  func.func @transform_6(%arg0: i32) -> (i32, i32) {
    %c0_i32 = arith.constant 0 : i32
    %c0_i32_0 = arith.constant 0 : i32
    return %arg0, %c0_i32 : i32, i32
  }
}

</mosaic_0001>

<llo_original>
// kernel: tpu_custom_call.1
$region0: #{tpu_custom_call.1}
  #allocation0 [shape = 'u32[]', space=smem, size = 0x4, offset = 0x4, fixed_abs, tag = 'smem constant byte address 0x4 - core index']
  #allocation1 [shape = 'u32[144,128]{1,0:T(1,128)}', space=vmem, size = 0x12000, scoped, tag = 'internal scratch']
  %s0 = inlined_call_operand.vmem [shape: bf16[256,32], index: 0, kind: input, shape index: {}]
  %s1 = inlined_call_operand.vmem [shape: bf16[32,640], index: 1, kind: input, shape index: {}]
  %s2 = inlined_call_operand.vmem [shape: f32[1,640], index: 2, kind: input, shape index: {}]
  %s3 = inlined_call_operand.hbm [shape: bf16[640,128], index: 3, kind: input, shape index: {}]
  %s4 = inlined_call_operand.vmem [shape: bf16[32,128], index: 4, kind: input, shape index: {}]
  %s5 = inlined_call_operand.vmem [shape: f32[1,128], index: 5, kind: input, shape index: {}]
  %s6 = inlined_call_operand.hbm [shape: f32[256,128], index: 6, kind: output, shape index: {}]
  %s7 = sld [smem:[#allocation0]]
  $region61: #{tpu_custom_call.1} parent=0
    _
  %s9 = ssub.s32 1, %s7
  %s10 = scalar_select 0, %s9, %s7
  $region1: #{tpu_custom_call.1} parent=0
    #allocation2 [shape = 'u8[163840]{0}', space=vmem, size = 0x28000, scoped, tag = 'input window, operand 3, single buffered']
    #allocation3 [shape = 's32[2]{0}', space=sflag, size = 0x8, scoped, tag = 'scoped memory for tpu_custom_call.1']
    #allocation4 [shape = 's32[2]{0}', space=sflag, size = 0x8, scoped, tag = 'scoped memory for tpu_custom_call.1']
    #allocation5 [shape = 'u8[131072]{0}', space=vmem, size = 0x20000, scoped, tag = 'output window, operand 0']
    %11 = vsyncpa [#allocation3], 0
    %12 = vsyncpa [#allocation4], 0
    %s13 = scalar_lea.sflag [#allocation4], 1
    %14 = vsyncpa %s13, 0
    loop: start=0, step=1, limit=4
    $region2: #{tpu_custom_call.1} parent=1 // loop_pre_header
      _
    $region3: #{tpu_custom_call.1} parent=1 // loop_header
      %s16 = sphi 0, %s20
      %p17 = scmp.ge.s32.totalorder %s16, 4
      %s26 = sphi 0, %s28
      %s29 = sphi 0, %s26
      %s30 = sphi 0, %s29
      %s46 = sphi 0, %s30
      %s50 = sphi 0, %s50
      %s52 = sphi 0, %s50
      %s53 = sphi 0, %s52
      %s67 = sphi 0, %s53
      %s71 = sphi 0, %s71
      %s73 = sphi 0, %s71
      %s74 = sphi 0, %s73
      %s88 = sphi 0, %s74
      %s92 = sphi 0, %s92
      %s94 = sphi 0, %s92
      %s95 = sphi 0, %s94
      %s109 = sphi 0, %s95
      %s113 = sphi 0, %s113
      %s115 = sphi 0, %s113
      %s116 = sphi 0, %s115
      %s130 = sphi 0, %s116
      %s134 = sphi 0, %s134
      %s136 = sphi 0, %s134
      %s137 = sphi 0, %s136
      %s151 = sphi 0, %s137
      %s157 = sphi 0, %s159
      %s160 = sphi 0, %s157
      %s161 = sphi 0, %s160
      %s177 = sphi 0, %s161
    $region4: #{tpu_custom_call.1} parent=1 // loop_header_branch
      %19 = sbr.rel (%p17) target = $region8
    $region5: #{tpu_custom_call.1} parent=1 // loop_body
      %s21 = ssub.s32 %s16, 1
      %s22 = ssub.s32 %s16, 2
      %s23 = sadd.s32 %s16, 1
      %s24 = ssub.s32 %s16, %s23
      %p25 = scmp.eq.s32.totalorder %s24, 0
      %s27 = sadd.s32 %s26, 1
      %s28 = scalar_select %p25, %s26, %s27
      %p31 = pneg %p25
      %p32 = scmp.eq.s32.totalorder %s16, 1
      %p33 = por %p31, %p32
      %p34 = scmp.ne.s32.totalorder %s26, %s29
      %p35 = scmp.eq.s32.totalorder %s16, 0
      %p36 = por %p34, %p35
      %p37 = scmp.ne.s32.totalorder %s26, %s29
      %p38 = scmp.eq.s32.totalorder %s21, 1
      %p39 = por %p37, %p38
      %p40 = scmp.ne.s32.totalorder %s29, %s30
      %p41 = scmp.eq.s32.totalorder %s21, 0
      %p42 = por %p40, %p41
      %p43 = scmp.ne.s32.totalorder %s29, %s30
      %p44 = scmp.eq.s32.totalorder %s22, 1
      %p45 = por %p43, %p44
      %p47 = scmp.ne.s32.totalorder %s30, %s46
      %p48 = scmp.eq.s32.totalorder %s22, 0
      %p49 = por %p47, %p48
      %s51 = sadd.s32 %s50, 1
      %p54 = scmp.eq.s32.totalorder %s16, 1
      %p55 = scmp.ne.s32.totalorder %s50, %s52
      %p56 = scmp.eq.s32.totalorder %s16, 0
      %p57 = por %p55, %p56
      %p58 = scmp.ne.s32.totalorder %s50, %s52
      %p59 = scmp.eq.s32.totalorder %s21, 1
      %p60 = por %p58, %p59
      %p61 = scmp.ne.s32.totalorder %s52, %s53
      %p62 = scmp.eq.s32.totalorder %s21, 0
      %p63 = por %p61, %p62
      %p64 = scmp.ne.s32.totalorder %s52, %s53
      %p65 = scmp.eq.s32.totalorder %s22, 1
      %p66 = por %p64, %p65
      %p68 = scmp.ne.s32.totalorder %s53, %s67
      %p69 = scmp.eq.s32.totalorder %s22, 0
      %p70 = por %p68, %p69
      %s72 = sadd.s32 %s71, 1
      %p75 = scmp.eq.s32.totalorder %s16, 1
      %p76 = scmp.ne.s32.totalorder %s71, %s73
      %p77 = scmp.eq.s32.totalorder %s16, 0
      %p78 = por %p76, %p77
      %p79 = scmp.ne.s32.totalorder %s71, %s73
      %p80 = scmp.eq.s32.totalorder %s21, 1
      %p81 = por %p79, %p80
      %p82 = scmp.ne.s32.totalorder %s73, %s74
      %p83 = scmp.eq.s32.totalorder %s21, 0
      %p84 = por %p82, %p83
      %p85 = scmp.ne.s32.totalorder %s73, %s74
      %p86 = scmp.eq.s32.totalorder %s22, 1
      %p87 = por %p85, %p86
      %p89 = scmp.ne.s32.totalorder %s74, %s88
      %p90 = scmp.eq.s32.totalorder %s22, 0
      %p91 = por %p89, %p90
      %s93 = sadd.s32 %s92, 1
      %p96 = scmp.eq.s32.totalorder %s16, 1
      %p97 = scmp.ne.s32.totalorder %s92, %s94
      %p98 = scmp.eq.s32.totalorder %s16, 0
      %p99 = por %p97, %p98
      %p100 = scmp.ne.s32.totalorder %s92, %s94
      %p101 = scmp.eq.s32.totalorder %s21, 1
      %p102 = por %p100, %p101
      %p103 = scmp.ne.s32.totalorder %s94, %s95
      %p104 = scmp.eq.s32.totalorder %s21, 0
      %p105 = por %p103, %p104
      %p106 = scmp.ne.s32.totalorder %s94, %s95
      %p107 = scmp.eq.s32.totalorder %s22, 1
      %p108 = por %p106, %p107
      %p110 = scmp.ne.s32.totalorder %s95, %s109
      %p111 = scmp.eq.s32.totalorder %s22, 0
      %p112 = por %p110, %p111
      %s114 = sadd.s32 %s113, 1
      %p117 = scmp.eq.s32.totalorder %s16, 1
      %p118 = scmp.ne.s32.totalorder %s113, %s115
      %p119 = scmp.eq.s32.totalorder %s16, 0
      %p120 = por %p118, %p119
      %p121 = scmp.ne.s32.totalorder %s113, %s115
      %p122 = scmp.eq.s32.totalorder %s21, 1
      %p123 = por %p121, %p122
      %p124 = scmp.ne.s32.totalorder %s115, %s116
      %p125 = scmp.eq.s32.totalorder %s21, 0
      %p126 = por %p124, %p125
      %p127 = scmp.ne.s32.totalorder %s115, %s116
      %p128 = scmp.eq.s32.totalorder %s22, 1
      %p129 = por %p127, %p128
      %p131 = scmp.ne.s32.totalorder %s116, %s130
      %p132 = scmp.eq.s32.totalorder %s22, 0
      %p133 = por %p131, %p132
      %s135 = sadd.s32 %s134, 1
      %p138 = scmp.eq.s32.totalorder %s16, 1
      %p139 = scmp.ne.s32.totalorder %s134, %s136
      %p140 = scmp.eq.s32.totalorder %s16, 0
      %p141 = por %p139, %p140
      %p142 = scmp.ne.s32.totalorder %s134, %s136
      %p143 = scmp.eq.s32.totalorder %s21, 1
      %p144 = por %p142, %p143
      %p145 = scmp.ne.s32.totalorder %s136, %s137
      %p146 = scmp.eq.s32.totalorder %s21, 0
      %p147 = por %p145, %p146
      %p148 = scmp.ne.s32.totalorder %s136, %s137
      %p149 = scmp.eq.s32.totalorder %s22, 1
      %p150 = por %p148, %p149
      %p152 = scmp.ne.s32.totalorder %s137, %s151
      %p153 = scmp.eq.s32.totalorder %s22, 0
      %p154 = por %p152, %p153
      %s155 = ssub.s32 %s16, %s23
      %p156 = scmp.eq.s32.totalorder %s155, 0
      %s158 = sadd.s32 %s157, 1
      %s159 = scalar_select %p156, %s157, %s158
      %p162 = pneg %p156
      %p163 = scmp.eq.s32.totalorder %s16, 1
      %p164 = por %p162, %p163
      %p165 = scmp.ne.s32.totalorder %s157, %s160
      %p166 = scmp.eq.s32.totalorder %s16, 0
      %p167 = por %p165, %p166
      %p168 = scmp.ne.s32.totalorder %s157, %s160
      %p169 = scmp.eq.s32.totalorder %s21, 1
      %p170 = por %p168, %p169
      %p171 = scmp.ne.s32.totalorder %s160, %s161
      %p172 = scmp.eq.s32.totalorder %s21, 0
      %p173 = por %p171, %p172
      %p174 = scmp.ne.s32.totalorder %s160, %s161
      %p175 = scmp.eq.s32.totalorder %s22, 1
      %p176 = por %p174, %p175
      %p178 = scmp.ne.s32.totalorder %s161, %s177
      %p179 = scmp.eq.s32.totalorder %s22, 0
      %p180 = por %p178, %p179
      %p181 = scmp.le.s32.totalorder 1, %s16
      %p182 = scmp.lt.s32.totalorder %s16, 3
      %p183 = pnand %p181, %p182
      %p184 = pneg %p183
      // Predicated region
      $region9: #{tpu_custom_call.1} parent=5 // pred_check
        _
      $region10: #{tpu_custom_call.1} parent=5 // pred_check_branch
        %186 = sbr.rel (%p183) target = $region12
      $region11: #{tpu_custom_call.1} parent=5 // pred_region
        %s187 = ssub.s32 %s16, 1
        // Predicated region
        $region13: #{tpu_custom_call.1} parent=11 // pred_check
          %p188 = pneg %p63
        $region14: #{tpu_custom_call.1} parent=11 // pred_check_branch
          %190 = sbr.rel (%p188) target = $region16
        $region15: #{tpu_custom_call.1} parent=11 // pred_region
          _
        $region16: #{tpu_custom_call.1} parent=11 // pred_fallthru
          _
        // Predicated region
        $region17: #{tpu_custom_call.1} parent=11 // pred_check
          %p191 = pneg %p84
        $region18: #{tpu_custom_call.1} parent=11 // pred_check_branch
          %193 = sbr.rel (%p191) target = $region20
        $region19: #{tpu_custom_call.1} parent=11 // pred_region
          _
        $region20: #{tpu_custom_call.1} parent=11 // pred_fallthru
          _
        // Predicated region
        $region21: #{tpu_custom_call.1} parent=11 // pred_check
          %p194 = pneg %p105
        $region22: #{tpu_custom_call.1} parent=11 // pred_check_branch
          %196 = sbr.rel (%p194) target = $region24
        $region23: #{tpu_custom_call.1} parent=11 // pred_region
          %s198 = ssub.s32 5120, 5120
          %199 = vsyncadd [#allocation3], %s198
          %s200 = sshll.u32 [#allocation2], 4
          %s201 = int_to_ptr.vmem [resolvable:$true] %s200
          %206 = dma.hbm_to_vmem [thread:$0]  %s3, 5120, %s201, [#allocation3], 64, 64, 4
        $region24: #{tpu_custom_call.1} parent=11 // pred_fallthru
          _
        // Predicated region
        $region25: #{tpu_custom_call.1} parent=11 // pred_check
          %p207 = pneg %p126
        $region26: #{tpu_custom_call.1} parent=11 // pred_check_branch
          %209 = sbr.rel (%p207) target = $region28
        $region27: #{tpu_custom_call.1} parent=11 // pred_region
          _
        $region28: #{tpu_custom_call.1} parent=11 // pred_fallthru
          _
        // Predicated region
        $region29: #{tpu_custom_call.1} parent=11 // pred_check
          %p210 = pneg %p147
        $region30: #{tpu_custom_call.1} parent=11 // pred_check_branch
          %212 = sbr.rel (%p210) target = $region32
        $region31: #{tpu_custom_call.1} parent=11 // pred_region
          _
        $region32: #{tpu_custom_call.1} parent=11 // pred_fallthru
          _
      $region12: #{tpu_custom_call.1} parent=5 // pred_fallthru
        _
      %p213 = scmp.lt.s32.totalorder %s16, 2
      // Predicated region
      $region33: #{tpu_custom_call.1} parent=5 // pred_check
        %p214 = pneg %p213
      $region34: #{tpu_custom_call.1} parent=5 // pred_check_branch
        %216 = sbr.rel (%p214) target = $region36
      $region35: #{tpu_custom_call.1} parent=5 // pred_region
        // Predicated region
        $region37: #{tpu_custom_call.1} parent=35 // pred_check
          %p217 = pneg %p36
        $region38: #{tpu_custom_call.1} parent=35 // pred_check_branch
          %219 = sbr.rel (%p217) target = $region40
        $region39: #{tpu_custom_call.1} parent=35 // pred_region
          %s220 = smul.u32 16, %s16
          %p221 = scmp.lt.s32.totalorder %s220, 31
          %s222 = scalar_select %p221, %s220, 31
          %s223 = smul.addr %s222, 4
          %s224 = scalar_lea.vmem %s0, %s223
          %s225 = smul.u32 16, %s16
        $region40: #{tpu_custom_call.1} parent=35 // pred_fallthru
          _
      $region36: #{tpu_custom_call.1} parent=5 // pred_fallthru
        _
      %p226 = scmp.le.s32.totalorder 1, %s16
      %p227 = scmp.lt.s32.totalorder %s16, 3
      %p228 = pnand %p226, %p227
      %p229 = pneg %p228
      // Predicated region
      $region41: #{tpu_custom_call.1} parent=5 // pred_check
        _
      $region42: #{tpu_custom_call.1} parent=5 // pred_check_branch
        %231 = sbr.rel (%p228) target = $region44
      $region43: #{tpu_custom_call.1} parent=5 // pred_region
        %s232 = ssub.s32 %s16, 1
        // Predicated region
        $region45: #{tpu_custom_call.1} parent=43 // pred_check
          %p233 = pneg %p105
        $region46: #{tpu_custom_call.1} parent=43 // pred_check_branch
          %235 = sbr.rel (%p233) target = $region48
        $region47: #{tpu_custom_call.1} parent=43 // pred_region
          %236 = dma.done [#allocation3], 5120
        $region48: #{tpu_custom_call.1} parent=43 // pred_fallthru
          _
        %s237 = smul.u32 16, %s21
        %p238 = scmp.lt.s32.totalorder %s237, 31
        %s239 = scalar_select %p238, %s237, 31
        %s240 = smul.addr %s239, 4
        %s241 = scalar_lea.vmem %s0, %s240
        %p242 = pneg %p42
        %p243 = pneg %p39
        %p244 = pneg %p63
        %p245 = pneg %p60
        %p246 = pneg %p84
        %p247 = pneg %p81
        %p248 = pneg %p105
        %p249 = pneg %p102
        %p250 = pneg %p126
        %p251 = pneg %p123
        %p252 = pneg %p147
        %p253 = pneg %p144
        %p254 = pneg %p173
        %p255 = pneg %p170
        %s256 = sand.u32 %s160, 1
        %s257 = scalar_lea.sflag [#allocation4], %s256
        %s258 = sand.u32 %s160, 1
        %s259 = smul.addr %s258, 128
        %s260 = scalar_lea.vmem [#allocation5], %s259
        %s261 = smul.u32 16, %s21
        %p262 = scmp.lt.s32.totalorder %s261, 31
        %s263 = scalar_select %p262, %s261, 31
        %s264 = smul.addr %s263, 4
        %s265 = scalar_lea.vmem %s0, %s264
        %s266 = smul.u32 16, %s21
        %s267 = smul.u32 16, %s21
        %v269 = vld [vmem:[%s265] sm:$0xf]
        %v270 = vld [vmem:[%s265 + $0x4] sm:$0xf]
        %v271 = vld [vmem:[%s265 + $0x8] sm:$0xf]
        %v272 = vld [vmem:[%s265 + $0xc] sm:$0xf]
        %v273 = vld [vmem:[%s265 + $0x10] sm:$0xf]
        %v274 = vld [vmem:[%s265 + $0x14] sm:$0xf]
        %v275 = vld [vmem:[%s265 + $0x18] sm:$0xf]
        %v276 = vld [vmem:[%s265 + $0x1c] sm:$0xf]
        %v277 = vld [vmem:[%s265 + $0x20] sm:$0xf]
        %v278 = vld [vmem:[%s265 + $0x24] sm:$0xf]
        %v279 = vld [vmem:[%s265 + $0x28] sm:$0xf]
        %v280 = vld [vmem:[%s265 + $0x2c] sm:$0xf]
        %v281 = vld [vmem:[%s265 + $0x30] sm:$0xf]
        %v282 = vld [vmem:[%s265 + $0x34] sm:$0xf]
        %v283 = vld [vmem:[%s265 + $0x38] sm:$0xf]
        %v284 = vld [vmem:[%s265 + $0x3c] sm:$0xf]
        %v285 = vld [vmem:[%s1] sm:$0xff]
        %v286 = vld [vmem:[%s1 + $0x8] sm:$0xff]
        %v287 = vld [vmem:[%s1 + $0x10] sm:$0xf]
        %v288 = vld [vmem:[%s1 + $0x14] sm:$0xff]
        %v289 = vld [vmem:[%s1 + $0x1c] sm:$0xff]
        %v290 = vld [vmem:[%s1 + $0x24] sm:$0xf]
        %v291 = vld [vmem:[%s1 + $0x28] sm:$0xff]
        %v292 = vld [vmem:[%s1 + $0x30] sm:$0xff]
        %v293 = vld [vmem:[%s1 + $0x38] sm:$0xf]
        %v294 = vld [vmem:[%s1 + $0x3c] sm:$0xff]
        %v295 = vld [vmem:[%s1 + $0x44] sm:$0xff]
        %v296 = vld [vmem:[%s1 + $0x4c] sm:$0xf]
        %v297 = vld [vmem:[%s2] sm:$0x1f]
        %v299 = vlaneseq
        %v300 = vshrl.u32 %v299, 7
        %v301 = vsub.s32 0, %v300
        %v302 = vrot.slane %v297, %v301
        %v303 = vlaneseq
        %v304 = vshrl.u32 %v303, 7
        %v305 = vsub.s32 1, %v304
        %v306 = vrot.slane %v297, %v305
        %v307 = vlaneseq
        %v308 = vshrl.u32 %v307, 7
        %v309 = vsub.s32 2, %v308
        %v310 = vrot.slane %v297, %v309
        %v311 = vlaneseq
        %v312 = vshrl.u32 %v311, 7
        %v313 = vsub.s32 3, %v312
        %v314 = vrot.slane %v297, %v313
        %v315 = vlaneseq
        %v316 = vshrl.u32 %v315, 7
        %v317 = vsub.s32 4, %v316
        %v318 = vrot.slane %v297, %v317
        %v340 = vunpack.c.l.b16 %v269
        %v341 = vunpack.c.l.b16 %v270
        %v342 = vunpack.c.l.b16 %v271
        %v343 = vunpack.c.l.b16 %v272
        %v344 = vunpack.c.l.b16 %v273
        %v345 = vunpack.c.l.b16 %v274
        %v346 = vunpack.c.l.b16 %v275
        %v347 = vunpack.c.l.b16 %v276
        %v348 = vunpack.c.l.b16 %v277
        %v349 = vunpack.c.l.b16 %v278
        %v350 = vunpack.c.l.b16 %v279
        %v351 = vunpack.c.l.b16 %v280
        %v352 = vunpack.c.l.b16 %v281
        %v353 = vunpack.c.l.b16 %v282
        %v354 = vunpack.c.l.b16 %v283
        %v355 = vunpack.c.l.b16 %v284
        %v356 = vpack.c.b16 %v341, %v340
        %v357 = vpack.c.b16 %v343, %v342
        %v358 = vpack.c.b16 %v345, %v344
        %v359 = vpack.c.b16 %v347, %v346
        %v360 = vpack.c.b16 %v349, %v348
        %v361 = vpack.c.b16 %v351, %v350
        %v362 = vpack.c.b16 %v353, %v352
        %v363 = vpack.c.b16 %v355, %v354
        %v376 = vunpack.c.l.b16 %v285
        %v377 = vunpack.c.h.b16 %v285
        %v378 = vunpack.c.l.b16 %v286
        %v379 = vunpack.c.h.b16 %v286
        %v380 = vunpack.c.l.b16 %v287
        %v381 = vunpack.c.l.b16 %v288
        %v382 = vunpack.c.h.b16 %v288
        %v383 = vunpack.c.l.b16 %v289
        %v384 = vunpack.c.h.b16 %v289
        %v385 = vunpack.c.l.b16 %v290
        %v386 = vunpack.c.l.b16 %v291
        %v387 = vunpack.c.h.b16 %v291
        %v388 = vunpack.c.l.b16 %v292
        %v389 = vunpack.c.h.b16 %v292
        %v390 = vunpack.c.l.b16 %v293
        %v391 = vunpack.c.l.b16 %v294
        %v392 = vunpack.c.h.b16 %v294
        %v393 = vunpack.c.l.b16 %v295
        %v394 = vunpack.c.h.b16 %v295
        %v395 = vunpack.c.l.b16 %v296
        %v396 = vpack.c.b16 %v381, %v376
        %v397 = vpack.c.b16 %v382, %v377
        %v398 = vpack.c.b16 %v383, %v378
        %v399 = vpack.c.b16 %v384, %v379
        %v400 = vpack.c.b16 %v385, %v380
        %v401 = vpack.c.b16 %v391, %v386
        %v402 = vpack.c.b16 %v392, %v387
        %v403 = vpack.c.b16 %v393, %v388
        %v404 = vpack.c.b16 %v394, %v389
        %v405 = vpack.c.b16 %v395, %v390
        %vm416 = vcmask 261120
        %v418 = vsel %vm416, %v356, 0
        %v421 = vsel %vm416, %v357, 0
        %v424 = vsel %vm416, %v358, 0
        %v427 = vsel %vm416, %v359, 0
        %v430 = vsel %vm416, %v360, 0
        %v433 = vsel %vm416, %v361, 0
        %v436 = vsel %vm416, %v362, 0
        %v439 = vsel %vm416, %v363, 0
        %441 = vmatprep.subr.bf16.mxu0 0
        %442 = vmatpush1.bf16.msra.mxu0 0
        %443 = vmatprep.subr.bf16.mxu0 0
        %444 = vmatpush1.bf16.msra.mxu0 0
        %445 = vmatprep.subr.bf16.mxu0 0
        %446 = vmatpush1.bf16.msra.mxu0 0
        %447 = vmatprep.subr.bf16.mxu0 0
        %448 = vmatpush1.bf16.msra.mxu0 0
        %449 = vmatprep.subr.bf16.mxu0 0
        %450 = vmatpush1.bf16.msra.mxu0 0
        %451 = vmatprep.subr.bf16.mxu0 0
        %452 = vmatpush1.bf16.msra.mxu0 0
        %453 = vmatprep.subr.bf16.mxu0 %v402
        %454 = vmatpush1.bf16.msra.mxu0 %v401
        %455 = vmatprep.subr.bf16.mxu0 %v397
        %456 = vmatpush1.bf16.msra.mxu0 %v396
        %457 = vmatprep.subr.bf16.mxu0 0
        %458 = vmatpush2.bf16.msra.mxu0 0
        %459 = vmatprep.subr.bf16.mxu0 0
        %460 = vmatpush2.bf16.msra.mxu0 0
        %461 = vmatprep.subr.bf16.mxu0 0
        %462 = vmatpush2.bf16.msra.mxu0 0
        %463 = vmatprep.subr.bf16.mxu0 0
        %464 = vmatpush2.bf16.msra.mxu0 0
        %465 = vmatprep.subr.bf16.mxu0 0
        %466 = vmatpush2.bf16.msra.mxu0 0
        %467 = vmatprep.subr.bf16.mxu0 0
        %468 = vmatpush2.bf16.msra.mxu0 0
        %469 = vmatprep.subr.bf16.mxu0 0
        %470 = vmatpush2.bf16.msra.mxu0 0
        %471 = vmatprep.subr.bf16.mxu0 0
        %472 = vmatpush2.bf16.msra.mxu0 0
        %473 = vmatprep.mubr.bf16.mxu0 0
        %474 = vmatmul.mubr.bf16.gmra.mxu0 %v418
        %v475 = vpop.f32.mrf.mxu0
        %v476 = vadd.f32 %v302, %v475
        %v477 = vpop.f32.mrf.mxu0
        %v478 = vadd.f32 %v306, %v477
        %v479 = vpop.f32.mrf.mxu0
        %v480 = vadd.f32 %v302, %v479
        %v481 = vpop.f32.mrf.mxu0
        %v482 = vadd.f32 %v306, %v481
        %483 = vmatprep.mubr.bf16.mxu0 0
        %484 = vmatmul.mubr.bf16.gmra.mxu0 %v421
        %v485 = vpop.f32.mrf.mxu0
        %v486 = vadd.f32 %v302, %v485
        %v487 = vpop.f32.mrf.mxu0
        %v488 = vadd.f32 %v306, %v487
        %v489 = vpop.f32.mrf.mxu0
        %v490 = vadd.f32 %v302, %v489
        %v491 = vpop.f32.mrf.mxu0
        %v492 = vadd.f32 %v306, %v491
        %493 = vmatprep.mubr.bf16.mxu0 0
        %494 = vmatmul.mubr.bf16.gmra.mxu0 %v424
        %v495 = vpop.f32.mrf.mxu0
        %v496 = vadd.f32 %v302, %v495
        %v497 = vpop.f32.mrf.mxu0
        %v498 = vadd.f32 %v306, %v497
        %v499 = vpop.f32.mrf.mxu0
        %v500 = vadd.f32 %v302, %v499
        %v501 = vpop.f32.mrf.mxu0
        %v502 = vadd.f32 %v306, %v501
        %503 = vmatprep.mubr.bf16.mxu0 0
        %504 = vmatmul.mubr.bf16.gmra.mxu0 %v427
        %v505 = vpop.f32.mrf.mxu0
        %v506 = vadd.f32 %v302, %v505
        %v507 = vpop.f32.mrf.mxu0
        %v508 = vadd.f32 %v306, %v507
        %v509 = vpop.f32.mrf.mxu0
        %v510 = vadd.f32 %v302, %v509
        %v511 = vpop.f32.mrf.mxu0
        %v512 = vadd.f32 %v306, %v511
        %513 = vmatprep.mubr.bf16.mxu0 0
        %514 = vmatmul.mubr.bf16.gmra.mxu0 %v430
        %v515 = vpop.f32.mrf.mxu0
        %v516 = vadd.f32 %v302, %v515
        %v517 = vpop.f32.mrf.mxu0
        %v518 = vadd.f32 %v306, %v517
        %v519 = vpop.f32.mrf.mxu0
        %v520 = vadd.f32 %v302, %v519
        %v521 = vpop.f32.mrf.mxu0
        %v522 = vadd.f32 %v306, %v521
        %523 = vmatprep.mubr.bf16.mxu0 0
        %524 = vmatmul.mubr.bf16.gmra.mxu0 %v433
        %v525 = vpop.f32.mrf.mxu0
        %v526 = vadd.f32 %v302, %v525
        %v527 = vpop.f32.mrf.mxu0
        %v528 = vadd.f32 %v306, %v527
        %v529 = vpop.f32.mrf.mxu0
        %v530 = vadd.f32 %v302, %v529
        %v531 = vpop.f32.mrf.mxu0
        %v532 = vadd.f32 %v306, %v531
        %533 = vmatprep.mubr.bf16.mxu0 0
        %534 = vmatmul.mubr.bf16.gmra.mxu0 %v436
        %v535 = vpop.f32.mrf.mxu0
        %v536 = vadd.f32 %v302, %v535
        %v537 = vpop.f32.mrf.mxu0
        %v538 = vadd.f32 %v306, %v537
        %v539 = vpop.f32.mrf.mxu0
        %v540 = vadd.f32 %v302, %v539
        %v541 = vpop.f32.mrf.mxu0
        %v542 = vadd.f32 %v306, %v541
        %543 = vmatprep.mubr.bf16.mxu0 0
        %544 = vmatmul.mubr.bf16.gmra.mxu0 %v439
        %v545 = vpop.f32.mrf.mxu0
        %v546 = vadd.f32 %v302, %v545
        %v547 = vpop.f32.mrf.mxu0
        %v548 = vadd.f32 %v306, %v547
        %v549 = vpop.f32.mrf.mxu0
        %v550 = vadd.f32 %v302, %v549
        %v551 = vpop.f32.mrf.mxu0
        %v552 = vadd.f32 %v306, %v551
        %553 = vdwg.mxu0
        %554 = vmatprep.subr.bf16.mxu0 0
        %555 = vmatpush1.bf16.msra.mxu0 0
        %556 = vmatprep.subr.bf16.mxu0 0
        %557 = vmatpush1.bf16.msra.mxu0 0
        %558 = vmatprep.subr.bf16.mxu0 0
        %559 = vmatpush1.bf16.msra.mxu0 0
        %560 = vmatprep.subr.bf16.mxu0 0
        %561 = vmatpush1.bf16.msra.mxu0 0
        %562 = vmatprep.subr.bf16.mxu0 0
        %563 = vmatpush1.bf16.msra.mxu0 0
        %564 = vmatprep.subr.bf16.mxu0 0
        %565 = vmatpush1.bf16.msra.mxu0 0
        %566 = vmatprep.subr.bf16.mxu0 %v404
        %567 = vmatpush1.bf16.msra.mxu0 %v403
        %568 = vmatprep.subr.bf16.mxu0 %v399
        %569 = vmatpush1.bf16.msra.mxu0 %v398
        %570 = vmatprep.subr.bf16.mxu0 0
        %571 = vmatpush2.bf16.msra.mxu0 0
        %572 = vmatprep.subr.bf16.mxu0 0
        %573 = vmatpush2.bf16.msra.mxu0 0
        %574 = vmatprep.subr.bf16.mxu0 0
        %575 = vmatpush2.bf16.msra.mxu0 0
        %576 = vmatprep.subr.bf16.mxu0 0
        %577 = vmatpush2.bf16.msra.mxu0 0
        %578 = vmatprep.subr.bf16.mxu0 0
        %579 = vmatpush2.bf16.msra.mxu0 0
        %580 = vmatprep.subr.bf16.mxu0 0
        %581 = vmatpush2.bf16.msra.mxu0 0
        %582 = vmatprep.subr.bf16.mxu0 0
        %583 = vmatpush2.bf16.msra.mxu0 0
        %584 = vmatprep.subr.bf16.mxu0 0
        %585 = vmatpush2.bf16.msra.mxu0 0
        %586 = vmatprep.mubr.bf16.mxu0 0
        %587 = vmatmul.mubr.bf16.gmra.mxu0 %v418
        %v588 = vpop.f32.mrf.mxu0
        %v589 = vadd.f32 %v310, %v588
        %v590 = vpop.f32.mrf.mxu0
        %v591 = vadd.f32 %v314, %v590
        %v592 = vpop.f32.mrf.mxu0
        %v593 = vadd.f32 %v310, %v592
        %v594 = vpop.f32.mrf.mxu0
        %v595 = vadd.f32 %v314, %v594
        %596 = vmatprep.mubr.bf16.mxu0 0
        %597 = vmatmul.mubr.bf16.gmra.mxu0 %v421
        %v598 = vpop.f32.mrf.mxu0
        %v599 = vadd.f32 %v310, %v598
        %v600 = vpop.f32.mrf.mxu0
        %v601 = vadd.f32 %v314, %v600
        %v602 = vpop.f32.mrf.mxu0
        %v603 = vadd.f32 %v310, %v602
        %v604 = vpop.f32.mrf.mxu0
        %v605 = vadd.f32 %v314, %v604
        %606 = vmatprep.mubr.bf16.mxu0 0
        %607 = vmatmul.mubr.bf16.gmra.mxu0 %v424
        %v608 = vpop.f32.mrf.mxu0
        %v609 = vadd.f32 %v310, %v608
        %v610 = vpop.f32.mrf.mxu0
        %v611 = vadd.f32 %v314, %v610
        %v612 = vpop.f32.mrf.mxu0
        %v613 = vadd.f32 %v310, %v612
        %v614 = vpop.f32.mrf.mxu0
        %v615 = vadd.f32 %v314, %v614
        %616 = vmatprep.mubr.bf16.mxu0 0
        %617 = vmatmul.mubr.bf16.gmra.mxu0 %v427
        %v618 = vpop.f32.mrf.mxu0
        %v619 = vadd.f32 %v310, %v618
        %v620 = vpop.f32.mrf.mxu0
        %v621 = vadd.f32 %v314, %v620
        %v622 = vpop.f32.mrf.mxu0
        %v623 = vadd.f32 %v310, %v622
        %v624 = vpop.f32.mrf.mxu0
        %v625 = vadd.f32 %v314, %v624
        %626 = vmatprep.mubr.bf16.mxu0 0
        %627 = vmatmul.mubr.bf16.gmra.mxu0 %v430
        %v628 = vpop.f32.mrf.mxu0
        %v629 = vadd.f32 %v310, %v628
        %v630 = vpop.f32.mrf.mxu0
        %v631 = vadd.f32 %v314, %v630
        %v632 = vpop.f32.mrf.mxu0
        %v633 = vadd.f32 %v310, %v632
        %v634 = vpop.f32.mrf.mxu0
        %v635 = vadd.f32 %v314, %v634
        %636 = vmatprep.mubr.bf16.mxu0 0
        %637 = vmatmul.mubr.bf16.gmra.mxu0 %v433
        %v638 = vpop.f32.mrf.mxu0
        %v639 = vadd.f32 %v310, %v638
        %v640 = vpop.f32.mrf.mxu0
        %v641 = vadd.f32 %v314, %v640
        %v642 = vpop.f32.mrf.mxu0
        %v643 = vadd.f32 %v310, %v642
        %v644 = vpop.f32.mrf.mxu0
        %v645 = vadd.f32 %v314, %v644
        %646 = vmatprep.mubr.bf16.mxu0 0
        %647 = vmatmul.mubr.bf16.gmra.mxu0 %v436
        %v648 = vpop.f32.mrf.mxu0
        %v649 = vadd.f32 %v310, %v648
        %v650 = vpop.f32.mrf.mxu0
        %v651 = vadd.f32 %v314, %v650
        %v652 = vpop.f32.mrf.mxu0
        %v653 = vadd.f32 %v310, %v652
        %v654 = vpop.f32.mrf.mxu0
        %v655 = vadd.f32 %v314, %v654
        %656 = vmatprep.mubr.bf16.mxu0 0
        %657 = vmatmul.mubr.bf16.gmra.mxu0 %v439
        %v658 = vpop.f32.mrf.mxu0
        %v659 = vadd.f32 %v310, %v658
        %v660 = vpop.f32.mrf.mxu0
        %v661 = vadd.f32 %v314, %v660
        %v662 = vpop.f32.mrf.mxu0
        %v663 = vadd.f32 %v310, %v662
        %v664 = vpop.f32.mrf.mxu0
        %v665 = vadd.f32 %v314, %v664
        %666 = vdwg.mxu0
        %667 = vmatprep.subr.bf16.mxu0 0
        %668 = vmatpush1.bf16.msra.mxu0 0
        %669 = vmatprep.subr.bf16.mxu0 0
        %670 = vmatpush1.bf16.msra.mxu0 0
        %671 = vmatprep.subr.bf16.mxu0 0
        %672 = vmatpush1.bf16.msra.mxu0 0
        %673 = vmatprep.subr.bf16.mxu0 0
        %674 = vmatpush1.bf16.msra.mxu0 0
        %675 = vmatprep.subr.bf16.mxu0 0
        %676 = vmatpush1.bf16.msra.mxu0 0
        %677 = vmatprep.subr.bf16.mxu0 0
        %678 = vmatpush1.bf16.msra.mxu0 0
        %679 = vmatprep.subr.bf16.mxu0 0
        %680 = vmatpush1.bf16.msra.mxu0 %v405
        %681 = vmatprep.subr.bf16.mxu0 0
        %682 = vmatpush1.bf16.msra.mxu0 %v400
        %683 = vmatprep.subr.bf16.mxu0 0
        %684 = vmatpush2.bf16.msra.mxu0 0
        %685 = vmatprep.subr.bf16.mxu0 0
        %686 = vmatpush2.bf16.msra.mxu0 0
        %687 = vmatprep.subr.bf16.mxu0 0
        %688 = vmatpush2.bf16.msra.mxu0 0
        %689 = vmatprep.subr.bf16.mxu0 0
        %690 = vmatpush2.bf16.msra.mxu0 0
        %691 = vmatprep.subr.bf16.mxu0 0
        %692 = vmatpush2.bf16.msra.mxu0 0
        %693 = vmatprep.subr.bf16.mxu0 0
        %694 = vmatpush2.bf16.msra.mxu0 0
        %695 = vmatprep.subr.bf16.mxu0 0
        %696 = vmatpush2.bf16.msra.mxu0 0
        %697 = vmatprep.subr.bf16.mxu0 0
        %698 = vmatpush2.bf16.msra.mxu0 0
        %699 = vmatprep.mubr.bf16.mxu0 0
        %700 = vmatmul.mubr.bf16.gmra.mxu0 %v418
        %v701 = vpop.f32.mrf.mxu0
        %v702 = vadd.f32 %v318, %v701
        %v703 = vpop.f32.mrf.mxu0
        %v704 = vpop.f32.mrf.mxu0
        %v705 = vadd.f32 %v318, %v704
        %v706 = vpop.f32.mrf.mxu0
        %707 = vmatprep.mubr.bf16.mxu0 0
        %708 = vmatmul.mubr.bf16.gmra.mxu0 %v421
        %v709 = vpop.f32.mrf.mxu0
        %v710 = vadd.f32 %v318, %v709
        %v711 = vpop.f32.mrf.mxu0
        %v712 = vpop.f32.mrf.mxu0
        %v713 = vadd.f32 %v318, %v712
        %v714 = vpop.f32.mrf.mxu0
        %715 = vmatprep.mubr.bf16.mxu0 0
        %716 = vmatmul.mubr.bf16.gmra.mxu0 %v424
        %v717 = vpop.f32.mrf.mxu0
        %v718 = vadd.f32 %v318, %v717
        %v719 = vpop.f32.mrf.mxu0
        %v720 = vpop.f32.mrf.mxu0
        %v721 = vadd.f32 %v318, %v720
        %v722 = vpop.f32.mrf.mxu0
        %723 = vmatprep.mubr.bf16.mxu0 0
        %724 = vmatmul.mubr.bf16.gmra.mxu0 %v427
        %v725 = vpop.f32.mrf.mxu0
        %v726 = vadd.f32 %v318, %v725
        %v727 = vpop.f32.mrf.mxu0
        %v728 = vpop.f32.mrf.mxu0
        %v729 = vadd.f32 %v318, %v728
        %v730 = vpop.f32.mrf.mxu0
        %731 = vmatprep.mubr.bf16.mxu0 0
        %732 = vmatmul.mubr.bf16.gmra.mxu0 %v430
        %v733 = vpop.f32.mrf.mxu0
        %v734 = vadd.f32 %v318, %v733
        %v735 = vpop.f32.mrf.mxu0
        %v736 = vpop.f32.mrf.mxu0
        %v737 = vadd.f32 %v318, %v736
        %v738 = vpop.f32.mrf.mxu0
        %739 = vmatprep.mubr.bf16.mxu0 0
        %740 = vmatmul.mubr.bf16.gmra.mxu0 %v433
        %v741 = vpop.f32.mrf.mxu0
        %v742 = vadd.f32 %v318, %v741
        %v743 = vpop.f32.mrf.mxu0
        %v744 = vpop.f32.mrf.mxu0
        %v745 = vadd.f32 %v318, %v744
        %v746 = vpop.f32.mrf.mxu0
        %747 = vmatprep.mubr.bf16.mxu0 0
        %748 = vmatmul.mubr.bf16.gmra.mxu0 %v436
        %v749 = vpop.f32.mrf.mxu0
        %v750 = vadd.f32 %v318, %v749
        %v751 = vpop.f32.mrf.mxu0
        %v752 = vpop.f32.mrf.mxu0
        %v753 = vadd.f32 %v318, %v752
        %v754 = vpop.f32.mrf.mxu0
        %755 = vmatprep.mubr.bf16.mxu0 0
        %756 = vmatmul.mubr.bf16.gmra.mxu0 %v439
        %v757 = vpop.f32.mrf.mxu0
        %v758 = vadd.f32 %v318, %v757
        %v759 = vpop.f32.mrf.mxu0
        %v760 = vpop.f32.mrf.mxu0
        %v761 = vadd.f32 %v318, %v760
        %v762 = vpop.f32.mrf.mxu0
        %763 = vdwg.mxu0
        %v764 = vmax.f32 %v476, 0.0
        %v765 = vmax.f32 %v478, 0.0
        %v766 = vmax.f32 %v589, 0.0
        %v767 = vmax.f32 %v591, 0.0
        %v768 = vmax.f32 %v702, 0.0
        %v769 = vmax.f32 %v480, 0.0
        %v770 = vmax.f32 %v482, 0.0
        %v771 = vmax.f32 %v593, 0.0
        %v772 = vmax.f32 %v595, 0.0
        %v773 = vmax.f32 %v705, 0.0
        %v774 = vmax.f32 %v486, 0.0
        %v775 = vmax.f32 %v488, 0.0
        %v776 = vmax.f32 %v599, 0.0
        %v777 = vmax.f32 %v601, 0.0
        %v778 = vmax.f32 %v710, 0.0
        %v779 = vmax.f32 %v490, 0.0
        %v780 = vmax.f32 %v492, 0.0
        %v781 = vmax.f32 %v603, 0.0
        %v782 = vmax.f32 %v605, 0.0
        %v783 = vmax.f32 %v713, 0.0
        %v784 = vmax.f32 %v496, 0.0
        %v785 = vmax.f32 %v498, 0.0
        %v786 = vmax.f32 %v609, 0.0
        %v787 = vmax.f32 %v611, 0.0
        %v788 = vmax.f32 %v718, 0.0
        %v789 = vmax.f32 %v500, 0.0
        %v790 = vmax.f32 %v502, 0.0
        %v791 = vmax.f32 %v613, 0.0
        %v792 = vmax.f32 %v615, 0.0
        %v793 = vmax.f32 %v721, 0.0
        %v794 = vmax.f32 %v506, 0.0
        %v795 = vmax.f32 %v508, 0.0
        %v796 = vmax.f32 %v619, 0.0
        %v797 = vmax.f32 %v621, 0.0
        %v798 = vmax.f32 %v726, 0.0
        %v799 = vmax.f32 %v510, 0.0
        %v800 = vmax.f32 %v512, 0.0
        %v801 = vmax.f32 %v623, 0.0
        %v802 = vmax.f32 %v625, 0.0
        %v803 = vmax.f32 %v729, 0.0
        %v804 = vmax.f32 %v516, 0.0
        %v805 = vmax.f32 %v518, 0.0
        %v806 = vmax.f32 %v629, 0.0
        %v807 = vmax.f32 %v631, 0.0
        %v808 = vmax.f32 %v734, 0.0
        %v809 = vmax.f32 %v520, 0.0
        %v810 = vmax.f32 %v522, 0.0
        %v811 = vmax.f32 %v633, 0.0
        %v812 = vmax.f32 %v635, 0.0
        %v813 = vmax.f32 %v737, 0.0
        %v814 = vmax.f32 %v526, 0.0
        %v815 = vmax.f32 %v528, 0.0
        %v816 = vmax.f32 %v639, 0.0
        %v817 = vmax.f32 %v641, 0.0
        %v818 = vmax.f32 %v742, 0.0
        %v819 = vmax.f32 %v530, 0.0
        %v820 = vmax.f32 %v532, 0.0
        %v821 = vmax.f32 %v643, 0.0
        %v822 = vmax.f32 %v645, 0.0
        %v823 = vmax.f32 %v745, 0.0
        %v824 = vmax.f32 %v536, 0.0
        %v825 = vmax.f32 %v538, 0.0
        %v826 = vmax.f32 %v649, 0.0
        %v827 = vmax.f32 %v651, 0.0
        %v828 = vmax.f32 %v750, 0.0
        %v829 = vmax.f32 %v540, 0.0
        %v830 = vmax.f32 %v542, 0.0
        %v831 = vmax.f32 %v653, 0.0
        %v832 = vmax.f32 %v655, 0.0
        %v833 = vmax.f32 %v753, 0.0
        %v834 = vmax.f32 %v546, 0.0
        %v835 = vmax.f32 %v548, 0.0
        %v836 = vmax.f32 %v659, 0.0
        %v837 = vmax.f32 %v661, 0.0
        %v838 = vmax.f32 %v758, 0.0
        %v839 = vmax.f32 %v550, 0.0
        %v840 = vmax.f32 %v552, 0.0
        %v841 = vmax.f32 %v663, 0.0
        %v842 = vmax.f32 %v665, 0.0
        %v843 = vmax.f32 %v761, 0.0
        %v844 = vpack.c.bf16 %v769, %v764
        %v845 = vpack.c.bf16 %v770, %v765
        %v846 = vpack.c.bf16 %v771, %v766
        %v847 = vpack.c.bf16 %v772, %v767
        %v848 = vpack.c.bf16 %v773, %v768
        %v849 = vpack.c.bf16 %v779, %v774
        %v850 = vpack.c.bf16 %v780, %v775
        %v851 = vpack.c.bf16 %v781, %v776
        %v852 = vpack.c.bf16 %v782, %v777
        %v853 = vpack.c.bf16 %v783, %v778
        %v854 = vpack.c.bf16 %v789, %v784
        %v855 = vpack.c.bf16 %v790, %v785
        %v856 = vpack.c.bf16 %v791, %v786
        %v857 = vpack.c.bf16 %v792, %v787
        %v858 = vpack.c.bf16 %v793, %v788
        %v859 = vpack.c.bf16 %v799, %v794
        %v860 = vpack.c.bf16 %v800, %v795
        %v861 = vpack.c.bf16 %v801, %v796
        %v862 = vpack.c.bf16 %v802, %v797
        %v863 = vpack.c.bf16 %v803, %v798
        %v864 = vpack.c.bf16 %v809, %v804
        %v865 = vpack.c.bf16 %v810, %v805
        %v866 = vpack.c.bf16 %v811, %v806
        %v867 = vpack.c.bf16 %v812, %v807
        %v868 = vpack.c.bf16 %v813, %v808
        %v869 = vpack.c.bf16 %v819, %v814
        %v870 = vpack.c.bf16 %v820, %v815
        %v871 = vpack.c.bf16 %v821, %v816
        %v872 = vpack.c.bf16 %v822, %v817
        %v873 = vpack.c.bf16 %v823, %v818
        %v874 = vpack.c.bf16 %v829, %v824
        %v875 = vpack.c.bf16 %v830, %v825
        %v876 = vpack.c.bf16 %v831, %v826
        %v877 = vpack.c.bf16 %v832, %v827
        %v878 = vpack.c.bf16 %v833, %v828
        %v879 = vpack.c.bf16 %v839, %v834
        %v880 = vpack.c.bf16 %v840, %v835
        %v881 = vpack.c.bf16 %v841, %v836
        %v882 = vpack.c.bf16 %v842, %v837
        %v883 = vpack.c.bf16 %v843, %v838
        %v884 = vld [vmem:[#allocation2] sm:$0xf]
        %v885 = vld [vmem:[#allocation2 + $0x4] sm:$0xf]
        %v886 = vld [vmem:[#allocation2 + $0x8] sm:$0xf]
        %v887 = vld [vmem:[#allocation2 + $0xc] sm:$0xf]
        %v888 = vld [vmem:[#allocation2 + $0x10] sm:$0xf]
        %v889 = vld [vmem:[#allocation2 + $0x14] sm:$0xf]
        %v890 = vld [vmem:[#allocation2 + $0x18] sm:$0xf]
        %v891 = vld [vmem:[#allocation2 + $0x1c] sm:$0xf]
        %v892 = vld [vmem:[#allocation2 + $0x20] sm:$0xf]
        %v893 = vld [vmem:[#allocation2 + $0x24] sm:$0xf]
        %v894 = vld [vmem:[#allocation2 + $0x28] sm:$0xf]
        %v895 = vld [vmem:[#allocation2 + $0x2c] sm:$0xf]
        %v896 = vld [vmem:[#allocation2 + $0x30] sm:$0xf]
        %v897 = vld [vmem:[#allocation2 + $0x34] sm:$0xf]
        %v898 = vld [vmem:[#allocation2 + $0x38] sm:$0xf]
        %v899 = vld [vmem:[#allocation2 + $0x3c] sm:$0xf]
        %v900 = vld [vmem:[#allocation2 + $0x40] sm:$0xf]
        %v901 = vld [vmem:[#allocation2 + $0x44] sm:$0xf]
        %v902 = vld [vmem:[#allocation2 + $0x48] sm:$0xf]
        %v903 = vld [vmem:[#allocation2 + $0x4c] sm:$0xf]
        %v904 = vld [vmem:[#allocation2 + $0x50] sm:$0xf]
        %v905 = vld [vmem:[#allocation2 + $0x54] sm:$0xf]
        %v906 = vld [vmem:[#allocation2 + $0x58] sm:$0xf]
        %v907 = vld [vmem:[#allocation2 + $0x5c] sm:$0xf]
        %v908 = vld [vmem:[#allocation2 + $0x60] sm:$0xf]
        %v909 = vld [vmem:[#allocation2 + $0x64] sm:$0xf]
        %v910 = vld [vmem:[#allocation2 + $0x68] sm:$0xf]
        %v911 = vld [vmem:[#allocation2 + $0x6c] sm:$0xf]
        %v912 = vld [vmem:[#allocation2 + $0x70] sm:$0xf]
        %v913 = vld [vmem:[#allocation2 + $0x74] sm:$0xf]
        %v914 = vld [vmem:[#allocation2 + $0x78] sm:$0xf]
        %v915 = vld [vmem:[#allocation2 + $0x7c] sm:$0xf]
        %v916 = vld [vmem:[#allocation2 + $0x80] sm:$0xf]
        %v917 = vld [vmem:[#allocation2 + $0x84] sm:$0xf]
        %v918 = vld [vmem:[#allocation2 + $0x88] sm:$0xf]
        %v919 = vld [vmem:[#allocation2 + $0x8c] sm:$0xf]
        %v920 = vld [vmem:[#allocation2 + $0x90] sm:$0xf]
        %v921 = vld [vmem:[#allocation2 + $0x94] sm:$0xf]
        %v922 = vld [vmem:[#allocation2 + $0x98] sm:$0xf]
        %v923 = vld [vmem:[#allocation2 + $0x9c] sm:$0xf]
        %v924 = vld [vmem:[#allocation2 + $0xa0] sm:$0xf]
        %v925 = vld [vmem:[#allocation2 + $0xa4] sm:$0xf]
        %v926 = vld [vmem:[#allocation2 + $0xa8] sm:$0xf]
        %v927 = vld [vmem:[#allocation2 + $0xac] sm:$0xf]
        %v928 = vld [vmem:[#allocation2 + $0xb0] sm:$0xf]
        %v929 = vld [vmem:[#allocation2 + $0xb4] sm:$0xf]
        %v930 = vld [vmem:[#allocation2 + $0xb8] sm:$0xf]
        %v931 = vld [vmem:[#allocation2 + $0xbc] sm:$0xf]
        %v932 = vld [vmem:[#allocation2 + $0xc0] sm:$0xf]
        %v933 = vld [vmem:[#allocation2 + $0xc4] sm:$0xf]
        %v934 = vld [vmem:[#allocation2 + $0xc8] sm:$0xf]
        %v935 = vld [vmem:[#allocation2 + $0xcc] sm:$0xf]
        %v936 = vld [vmem:[#allocation2 + $0xd0] sm:$0xf]
        %v937 = vld [vmem:[#allocation2 + $0xd4] sm:$0xf]
        %v938 = vld [vmem:[#allocation2 + $0xd8] sm:$0xf]
        %v939 = vld [vmem:[#allocation2 + $0xdc] sm:$0xf]
        %v940 = vld [vmem:[#allocation2 + $0xe0] sm:$0xf]
        %v941 = vld [vmem:[#allocation2 + $0xe4] sm:$0xf]
        %v942 = vld [vmem:[#allocation2 + $0xe8] sm:$0xf]
        %v943 = vld [vmem:[#allocation2 + $0xec] sm:$0xf]
        %v944 = vld [vmem:[#allocation2 + $0xf0] sm:$0xf]
        %v945 = vld [vmem:[#allocation2 + $0xf4] sm:$0xf]
        %v946 = vld [vmem:[#allocation2 + $0xf8] sm:$0xf]
        %v947 = vld [vmem:[#allocation2 + $0xfc] sm:$0xf]
        %v948 = vld [vmem:[#allocation2 + $0x100] sm:$0xf]
        %v949 = vld [vmem:[#allocation2 + $0x104] sm:$0xf]
        %v950 = vld [vmem:[#allocation2 + $0x108] sm:$0xf]
        %v951 = vld [vmem:[#allocation2 + $0x10c] sm:$0xf]
        %v952 = vld [vmem:[#allocation2 + $0x110] sm:$0xf]
        %v953 = vld [vmem:[#allocation2 + $0x114] sm:$0xf]
        %v954 = vld [vmem:[#allocation2 + $0x118] sm:$0xf]
        %v955 = vld [vmem:[#allocation2 + $0x11c] sm:$0xf]
        %v956 = vld [vmem:[#allocation2 + $0x120] sm:$0xf]
        %v957 = vld [vmem:[#allocation2 + $0x124] sm:$0xf]
        %v958 = vld [vmem:[#allocation2 + $0x128] sm:$0xf]
        %v959 = vld [vmem:[#allocation2 + $0x12c] sm:$0xf]
        %v960 = vld [vmem:[#allocation2 + $0x130] sm:$0xf]
        %v961 = vld [vmem:[#allocation2 + $0x134] sm:$0xf]
        %v962 = vld [vmem:[#allocation2 + $0x138] sm:$0xf]
        %v963 = vld [vmem:[#allocation2 + $0x13c] sm:$0xf]
        %v964 = vld [vmem:[%s4] sm:$0xf]
        %v965 = vld [vmem:[%s4 + $0x4] sm:$0xf]
        %v966 = vld [vmem:[%s4 + $0x8] sm:$0xf]
        %v967 = vld [vmem:[%s4 + $0xc] sm:$0xf]
        %v972 = vunpack.c.l.b16 %v964
        %v973 = vunpack.c.l.b16 %v965
        %v974 = vunpack.c.l.b16 %v966
        %v975 = vunpack.c.l.b16 %v967
        %v976 = vpack.c.b16 %v973, %v972
        %v977 = vpack.c.b16 %v975, %v974
        %980 = vmatprep.subr.bf16.mxu0 0
        %981 = vmatpush1.bf16.msra.mxu0 0
        %982 = vmatprep.subr.bf16.mxu0 0
        %983 = vmatpush1.bf16.msra.mxu0 0
        %984 = vmatprep.subr.bf16.mxu0 0
        %985 = vmatpush1.bf16.msra.mxu0 0
        %986 = vmatprep.subr.bf16.mxu0 0
        %987 = vmatpush1.bf16.msra.mxu0 0
        %988 = vmatprep.subr.bf16.mxu0 0
        %989 = vmatpush1.bf16.msra.mxu0 0
        %990 = vmatprep.subr.bf16.mxu0 0
        %991 = vmatpush1.bf16.msra.mxu0 0
        %992 = vmatprep.subr.bf16.mxu0 0
        %993 = vmatpush1.bf16.msra.mxu0 %v977
        %994 = vmatprep.subr.bf16.mxu0 0
        %995 = vmatpush1.bf16.msra.mxu0 %v976
        %996 = vmatprep.subr.bf16.mxu0 0
        %997 = vmatpush2.bf16.msra.mxu0 0
        %998 = vmatprep.subr.bf16.mxu0 0
        %999 = vmatpush2.bf16.msra.mxu0 0
        %1000 = vmatprep.subr.bf16.mxu0 0
        %1001 = vmatpush2.bf16.msra.mxu0 0
        %1002 = vmatprep.subr.bf16.mxu0 0
        %1003 = vmatpush2.bf16.msra.mxu0 0
        %1004 = vmatprep.subr.bf16.mxu0 0
        %1005 = vmatpush2.bf16.msra.mxu0 0
        %1006 = vmatprep.subr.bf16.mxu0 0
        %1007 = vmatpush2.bf16.msra.mxu0 0
        %1008 = vmatprep.subr.bf16.mxu0 0
        %1009 = vmatpush2.bf16.msra.mxu0 0
        %1010 = vmatprep.subr.bf16.mxu0 0
        %1011 = vmatpush2.bf16.msra.mxu0 0
        %1012 = vmatprep.mubr.bf16.mxu0 0
        %1013 = vmatmul.mubr.bf16.gmra.mxu0 %v418
        %v1014 = vpop.f32.mrf.mxu0
        %v1015 = vadd.f32 0.0, %v1014
        %v1016 = vpop.f32.mrf.mxu0
        %v1017 = vpop.f32.mrf.mxu0
        %v1018 = vadd.f32 0.0, %v1017
        %v1019 = vpop.f32.mrf.mxu0
        %1020 = vmatprep.mubr.bf16.mxu0 0
        %1021 = vmatmul.mubr.bf16.gmra.mxu0 %v421
        %v1022 = vpop.f32.mrf.mxu0
        %v1023 = vadd.f32 0.0, %v1022
        %v1024 = vpop.f32.mrf.mxu0
        %v1025 = vpop.f32.mrf.mxu0
        %v1026 = vadd.f32 0.0, %v1025
        %v1027 = vpop.f32.mrf.mxu0
        %1028 = vmatprep.mubr.bf16.mxu0 0
        %1029 = vmatmul.mubr.bf16.gmra.mxu0 %v424
        %v1030 = vpop.f32.mrf.mxu0
        %v1031 = vadd.f32 0.0, %v1030
        %v1032 = vpop.f32.mrf.mxu0
        %v1033 = vpop.f32.mrf.mxu0
        %v1034 = vadd.f32 0.0, %v1033
        %v1035 = vpop.f32.mrf.mxu0
        %1036 = vmatprep.mubr.bf16.mxu0 0
        %1037 = vmatmul.mubr.bf16.gmra.mxu0 %v427
        %v1038 = vpop.f32.mrf.mxu0
        %v1039 = vadd.f32 0.0, %v1038
        %v1040 = vpop.f32.mrf.mxu0
        %v1041 = vpop.f32.mrf.mxu0
        %v1042 = vadd.f32 0.0, %v1041
        %v1043 = vpop.f32.mrf.mxu0
        %1044 = vmatprep.mubr.bf16.mxu0 0
        %1045 = vmatmul.mubr.bf16.gmra.mxu0 %v430
        %v1046 = vpop.f32.mrf.mxu0
        %v1047 = vadd.f32 0.0, %v1046
        %v1048 = vpop.f32.mrf.mxu0
        %v1049 = vpop.f32.mrf.mxu0
        %v1050 = vadd.f32 0.0, %v1049
        %v1051 = vpop.f32.mrf.mxu0
        %1052 = vmatprep.mubr.bf16.mxu0 0
        %1053 = vmatmul.mubr.bf16.gmra.mxu0 %v433
        %v1054 = vpop.f32.mrf.mxu0
        %v1055 = vadd.f32 0.0, %v1054
        %v1056 = vpop.f32.mrf.mxu0
        %v1057 = vpop.f32.mrf.mxu0
        %v1058 = vadd.f32 0.0, %v1057
        %v1059 = vpop.f32.mrf.mxu0
        %1060 = vmatprep.mubr.bf16.mxu0 0
        %1061 = vmatmul.mubr.bf16.gmra.mxu0 %v436
        %v1062 = vpop.f32.mrf.mxu0
        %v1063 = vadd.f32 0.0, %v1062
        %v1064 = vpop.f32.mrf.mxu0
        %v1065 = vpop.f32.mrf.mxu0
        %v1066 = vadd.f32 0.0, %v1065
        %v1067 = vpop.f32.mrf.mxu0
        %1068 = vmatprep.mubr.bf16.mxu0 0
        %1069 = vmatmul.mubr.bf16.gmra.mxu0 %v439
        %v1070 = vpop.f32.mrf.mxu0
        %v1071 = vadd.f32 0.0, %v1070
        %v1072 = vpop.f32.mrf.mxu0
        %v1073 = vpop.f32.mrf.mxu0
        %v1074 = vadd.f32 0.0, %v1073
        %v1075 = vpop.f32.mrf.mxu0
        %1076 = vdwg.mxu0
        %v1157 = vunpack.c.l.b16 %v884
        %v1158 = vunpack.c.l.b16 %v885
        %v1159 = vunpack.c.l.b16 %v886
        %v1160 = vunpack.c.l.b16 %v887
        %v1161 = vunpack.c.l.b16 %v888
        %v1162 = vunpack.c.l.b16 %v889
        %v1163 = vunpack.c.l.b16 %v890
        %v1164 = vunpack.c.l.b16 %v891
        %v1165 = vunpack.c.l.b16 %v892
        %v1166 = vunpack.c.l.b16 %v893
        %v1167 = vunpack.c.l.b16 %v894
        %v1168 = vunpack.c.l.b16 %v895
        %v1169 = vunpack.c.l.b16 %v896
        %v1170 = vunpack.c.l.b16 %v897
        %v1171 = vunpack.c.l.b16 %v898
        %v1172 = vunpack.c.l.b16 %v899
        %v1173 = vunpack.c.l.b16 %v900
        %v1174 = vunpack.c.l.b16 %v901
        %v1175 = vunpack.c.l.b16 %v902
        %v1176 = vunpack.c.l.b16 %v903
        %v1177 = vunpack.c.l.b16 %v904
        %v1178 = vunpack.c.l.b16 %v905
        %v1179 = vunpack.c.l.b16 %v906
        %v1180 = vunpack.c.l.b16 %v907
        %v1181 = vunpack.c.l.b16 %v908
        %v1182 = vunpack.c.l.b16 %v909
        %v1183 = vunpack.c.l.b16 %v910
        %v1184 = vunpack.c.l.b16 %v911
        %v1185 = vunpack.c.l.b16 %v912
        %v1186 = vunpack.c.l.b16 %v913
        %v1187 = vunpack.c.l.b16 %v914
        %v1188 = vunpack.c.l.b16 %v915
        %v1189 = vunpack.c.l.b16 %v916
        %v1190 = vunpack.c.l.b16 %v917
        %v1191 = vunpack.c.l.b16 %v918
        %v1192 = vunpack.c.l.b16 %v919
        %v1193 = vunpack.c.l.b16 %v920
        %v1194 = vunpack.c.l.b16 %v921
        %v1195 = vunpack.c.l.b16 %v922
        %v1196 = vunpack.c.l.b16 %v923
        %v1197 = vunpack.c.l.b16 %v924
        %v1198 = vunpack.c.l.b16 %v925
        %v1199 = vunpack.c.l.b16 %v926
        %v1200 = vunpack.c.l.b16 %v927
        %v1201 = vunpack.c.l.b16 %v928
        %v1202 = vunpack.c.l.b16 %v929
        %v1203 = vunpack.c.l.b16 %v930
        %v1204 = vunpack.c.l.b16 %v931
        %v1205 = vunpack.c.l.b16 %v932
        %v1206 = vunpack.c.l.b16 %v933
        %v1207 = vunpack.c.l.b16 %v934
        %v1208 = vunpack.c.l.b16 %v935
        %v1209 = vunpack.c.l.b16 %v936
        %v1210 = vunpack.c.l.b16 %v937
        %v1211 = vunpack.c.l.b16 %v938
        %v1212 = vunpack.c.l.b16 %v939
        %v1213 = vunpack.c.l.b16 %v940
        %v1214 = vunpack.c.l.b16 %v941
        %v1215 = vunpack.c.l.b16 %v942
        %v1216 = vunpack.c.l.b16 %v943
        %v1217 = vunpack.c.l.b16 %v944
        %v1218 = vunpack.c.l.b16 %v945
        %v1219 = vunpack.c.l.b16 %v946
        %v1220 = vunpack.c.l.b16 %v947
        %v1221 = vunpack.c.l.b16 %v948
        %v1222 = vunpack.c.l.b16 %v949
        %v1223 = vunpack.c.l.b16 %v950
        %v1224 = vunpack.c.l.b16 %v951
        %v1225 = vunpack.c.l.b16 %v952
        %v1226 = vunpack.c.l.b16 %v953
        %v1227 = vunpack.c.l.b16 %v954
        %v1228 = vunpack.c.l.b16 %v955
        %v1229 = vunpack.c.l.b16 %v956
        %v1230 = vunpack.c.l.b16 %v957
        %v1231 = vunpack.c.l.b16 %v958
        %v1232 = vunpack.c.l.b16 %v959
        %v1233 = vunpack.c.l.b16 %v960
        %v1234 = vunpack.c.l.b16 %v961
        %v1235 = vunpack.c.l.b16 %v962
        %v1236 = vunpack.c.l.b16 %v963
        %v1237 = vpack.c.b16 %v1158, %v1157
        %v1238 = vpack.c.b16 %v1160, %v1159
        %v1239 = vpack.c.b16 %v1162, %v1161
        %v1240 = vpack.c.b16 %v1164, %v1163
        %v1241 = vpack.c.b16 %v1166, %v1165
        %v1242 = vpack.c.b16 %v1168, %v1167
        %v1243 = vpack.c.b16 %v1170, %v1169
        %v1244 = vpack.c.b16 %v1172, %v1171
        %v1245 = vpack.c.b16 %v1174, %v1173
        %v1246 = vpack.c.b16 %v1176, %v1175
        %v1247 = vpack.c.b16 %v1178, %v1177
        %v1248 = vpack.c.b16 %v1180, %v1179
        %v1249 = vpack.c.b16 %v1182, %v1181
        %v1250 = vpack.c.b16 %v1184, %v1183
        %v1251 = vpack.c.b16 %v1186, %v1185
        %v1252 = vpack.c.b16 %v1188, %v1187
        %v1253 = vpack.c.b16 %v1190, %v1189
        %v1254 = vpack.c.b16 %v1192, %v1191
        %v1255 = vpack.c.b16 %v1194, %v1193
        %v1256 = vpack.c.b16 %v1196, %v1195
        %v1257 = vpack.c.b16 %v1198, %v1197
        %v1258 = vpack.c.b16 %v1200, %v1199
        %v1259 = vpack.c.b16 %v1202, %v1201
        %v1260 = vpack.c.b16 %v1204, %v1203
        %v1261 = vpack.c.b16 %v1206, %v1205
        %v1262 = vpack.c.b16 %v1208, %v1207
        %v1263 = vpack.c.b16 %v1210, %v1209
        %v1264 = vpack.c.b16 %v1212, %v1211
        %v1265 = vpack.c.b16 %v1214, %v1213
        %v1266 = vpack.c.b16 %v1216, %v1215
        %v1267 = vpack.c.b16 %v1218, %v1217
        %v1268 = vpack.c.b16 %v1220, %v1219
        %v1269 = vpack.c.b16 %v1222, %v1221
        %v1270 = vpack.c.b16 %v1224, %v1223
        %v1271 = vpack.c.b16 %v1226, %v1225
        %v1272 = vpack.c.b16 %v1228, %v1227
        %v1273 = vpack.c.b16 %v1230, %v1229
        %v1274 = vpack.c.b16 %v1232, %v1231
        %v1275 = vpack.c.b16 %v1234, %v1233
        %v1276 = vpack.c.b16 %v1236, %v1235
        %1317 = vmatprep.subr.bf16.mxu0 0
        %1318 = vmatpush1.bf16.msra.mxu0 %v1244
        %1319 = vmatprep.subr.bf16.mxu0 0
        %1320 = vmatpush1.bf16.msra.mxu0 %v1243
        %1321 = vmatprep.subr.bf16.mxu0 0
        %1322 = vmatpush1.bf16.msra.mxu0 %v1242
        %1323 = vmatprep.subr.bf16.mxu0 0
        %1324 = vmatpush1.bf16.msra.mxu0 %v1241
        %1325 = vmatprep.subr.bf16.mxu0 0
        %1326 = vmatpush1.bf16.msra.mxu0 %v1240
        %1327 = vmatprep.subr.bf16.mxu0 0
        %1328 = vmatpush1.bf16.msra.mxu0 %v1239
        %1329 = vmatprep.subr.bf16.mxu0 0
        %1330 = vmatpush1.bf16.msra.mxu0 %v1238
        %1331 = vmatprep.subr.bf16.mxu0 0
        %1332 = vmatpush1.bf16.msra.mxu0 %v1237
        %1333 = vmatprep.subr.bf16.mxu0 0
        %1334 = vmatpush2.bf16.msra.mxu0 %v1252
        %1335 = vmatprep.subr.bf16.mxu0 0
        %1336 = vmatpush2.bf16.msra.mxu0 %v1251
        %1337 = vmatprep.subr.bf16.mxu0 0
        %1338 = vmatpush2.bf16.msra.mxu0 %v1250
        %1339 = vmatprep.subr.bf16.mxu0 0
        %1340 = vmatpush2.bf16.msra.mxu0 %v1249
        %1341 = vmatprep.subr.bf16.mxu0 0
        %1342 = vmatpush2.bf16.msra.mxu0 %v1248
        %1343 = vmatprep.subr.bf16.mxu0 0
        %1344 = vmatpush2.bf16.msra.mxu0 %v1247
        %1345 = vmatprep.subr.bf16.mxu0 0
        %1346 = vmatpush2.bf16.msra.mxu0 %v1246
        %1347 = vmatprep.subr.bf16.mxu0 0
        %1348 = vmatpush2.bf16.msra.mxu0 %v1245
        %1349 = vmatprep.mubr.bf16.mxu0 %v845
        %1350 = vmatmul.mubr.bf16.gmra.mxu0 %v844
        %v1351 = vpop.f32.mrf.mxu0
        %v1352 = vadd.f32 %v1015, %v1351
        %v1353 = vpop.f32.mrf.mxu0
        %v1354 = vpop.f32.mrf.mxu0
        %v1355 = vadd.f32 %v1018, %v1354
        %v1356 = vpop.f32.mrf.mxu0
        %1357 = vmatprep.mubr.bf16.mxu0 %v850
        %1358 = vmatmul.mubr.bf16.gmra.mxu0 %v849
        %v1359 = vpop.f32.mrf.mxu0
        %v1360 = vadd.f32 %v1023, %v1359
        %v1361 = vpop.f32.mrf.mxu0
        %v1362 = vpop.f32.mrf.mxu0
        %v1363 = vadd.f32 %v1026, %v1362
        %v1364 = vpop.f32.mrf.mxu0
        %1365 = vmatprep.mubr.bf16.mxu0 %v855
        %1366 = vmatmul.mubr.bf16.gmra.mxu0 %v854
        %v1367 = vpop.f32.mrf.mxu0
        %v1368 = vadd.f32 %v1031, %v1367
        %v1369 = vpop.f32.mrf.mxu0
        %v1370 = vpop.f32.mrf.mxu0
        %v1371 = vadd.f32 %v1034, %v1370
        %v1372 = vpop.f32.mrf.mxu0
        %1373 = vmatprep.mubr.bf16.mxu0 %v860
        %1374 = vmatmul.mubr.bf16.gmra.mxu0 %v859
        %v1375 = vpop.f32.mrf.mxu0
        %v1376 = vadd.f32 %v1039, %v1375
        %v1377 = vpop.f32.mrf.mxu0
        %v1378 = vpop.f32.mrf.mxu0
        %v1379 = vadd.f32 %v1042, %v1378
        %v1380 = vpop.f32.mrf.mxu0
        %1381 = vmatprep.mubr.bf16.mxu0 %v865
        %1382 = vmatmul.mubr.bf16.gmra.mxu0 %v864
        %v1383 = vpop.f32.mrf.mxu0
        %v1384 = vadd.f32 %v1047, %v1383
        %v1385 = vpop.f32.mrf.mxu0
        %v1386 = vpop.f32.mrf.mxu0
        %v1387 = vadd.f32 %v1050, %v1386
        %v1388 = vpop.f32.mrf.mxu0
        %1389 = vmatprep.mubr.bf16.mxu0 %v870
        %1390 = vmatmul.mubr.bf16.gmra.mxu0 %v869
        %v1391 = vpop.f32.mrf.mxu0
        %v1392 = vadd.f32 %v1055, %v1391
        %v1393 = vpop.f32.mrf.mxu0
        %v1394 = vpop.f32.mrf.mxu0
        %v1395 = vadd.f32 %v1058, %v1394
        %v1396 = vpop.f32.mrf.mxu0
        %1397 = vmatprep.mubr.bf16.mxu0 %v875
        %1398 = vmatmul.mubr.bf16.gmra.mxu0 %v874
        %v1399 = vpop.f32.mrf.mxu0
        %v1400 = vadd.f32 %v1063, %v1399
        %v1401 = vpop.f32.mrf.mxu0
        %v1402 = vpop.f32.mrf.mxu0
        %v1403 = vadd.f32 %v1066, %v1402
        %v1404 = vpop.f32.mrf.mxu0
        %1405 = vmatprep.mubr.bf16.mxu0 %v880
        %1406 = vmatmul.mubr.bf16.gmra.mxu0 %v879
        %v1407 = vpop.f32.mrf.mxu0
        %v1408 = vadd.f32 %v1071, %v1407
        %v1409 = vpop.f32.mrf.mxu0
        %v1410 = vpop.f32.mrf.mxu0
        %v1411 = vadd.f32 %v1074, %v1410
        %v1412 = vpop.f32.mrf.mxu0
        %1413 = vdwg.mxu0
        %1414 = vmatprep.subr.bf16.mxu0 0
        %1415 = vmatpush1.bf16.msra.mxu0 %v1260
        %1416 = vmatprep.subr.bf16.mxu0 0
        %1417 = vmatpush1.bf16.msra.mxu0 %v1259
        %1418 = vmatprep.subr.bf16.mxu0 0
        %1419 = vmatpush1.bf16.msra.mxu0 %v1258
        %1420 = vmatprep.subr.bf16.mxu0 0
        %1421 = vmatpush1.bf16.msra.mxu0 %v1257
        %1422 = vmatprep.subr.bf16.mxu0 0
        %1423 = vmatpush1.bf16.msra.mxu0 %v1256
        %1424 = vmatprep.subr.bf16.mxu0 0
        %1425 = vmatpush1.bf16.msra.mxu0 %v1255
        %1426 = vmatprep.subr.bf16.mxu0 0
        %1427 = vmatpush1.bf16.msra.mxu0 %v1254
        %1428 = vmatprep.subr.bf16.mxu0 0
        %1429 = vmatpush1.bf16.msra.mxu0 %v1253
        %1430 = vmatprep.subr.bf16.mxu0 0
        %1431 = vmatpush2.bf16.msra.mxu0 %v1268
        %1432 = vmatprep.subr.bf16.mxu0 0
        %1433 = vmatpush2.bf16.msra.mxu0 %v1267
        %1434 = vmatprep.subr.bf16.mxu0 0
        %1435 = vmatpush2.bf16.msra.mxu0 %v1266
        %1436 = vmatprep.subr.bf16.mxu0 0
        %1437 = vmatpush2.bf16.msra.mxu0 %v1265
        %1438 = vmatprep.subr.bf16.mxu0 0
        %1439 = vmatpush2.bf16.msra.mxu0 %v1264
        %1440 = vmatprep.subr.bf16.mxu0 0
        %1441 = vmatpush2.bf16.msra.mxu0 %v1263
        %1442 = vmatprep.subr.bf16.mxu0 0
        %1443 = vmatpush2.bf16.msra.mxu0 %v1262
        %1444 = vmatprep.subr.bf16.mxu0 0
        %1445 = vmatpush2.bf16.msra.mxu0 %v1261
        %1446 = vmatprep.mubr.bf16.mxu0 %v847
        %1447 = vmatmul.mubr.bf16.gmra.mxu0 %v846
        %v1448 = vpop.f32.mrf.mxu0
        %v1449 = vadd.f32 %v1352, %v1448
        %v1450 = vpop.f32.mrf.mxu0
        %v1451 = vpop.f32.mrf.mxu0
        %v1452 = vadd.f32 %v1355, %v1451
        %v1453 = vpop.f32.mrf.mxu0
        %1454 = vmatprep.mubr.bf16.mxu0 %v852
        %1455 = vmatmul.mubr.bf16.gmra.mxu0 %v851
        %v1456 = vpop.f32.mrf.mxu0
        %v1457 = vadd.f32 %v1360, %v1456
        %v1458 = vpop.f32.mrf.mxu0
        %v1459 = vpop.f32.mrf.mxu0
        %v1460 = vadd.f32 %v1363, %v1459
        %v1461 = vpop.f32.mrf.mxu0
        %1462 = vmatprep.mubr.bf16.mxu0 %v857
        %1463 = vmatmul.mubr.bf16.gmra.mxu0 %v856
        %v1464 = vpop.f32.mrf.mxu0
        %v1465 = vadd.f32 %v1368, %v1464
        %v1466 = vpop.f32.mrf.mxu0
        %v1467 = vpop.f32.mrf.mxu0
        %v1468 = vadd.f32 %v1371, %v1467
        %v1469 = vpop.f32.mrf.mxu0
        %1470 = vmatprep.mubr.bf16.mxu0 %v862
        %1471 = vmatmul.mubr.bf16.gmra.mxu0 %v861
        %v1472 = vpop.f32.mrf.mxu0
        %v1473 = vadd.f32 %v1376, %v1472
        %v1474 = vpop.f32.mrf.mxu0
        %v1475 = vpop.f32.mrf.mxu0
        %v1476 = vadd.f32 %v1379, %v1475
        %v1477 = vpop.f32.mrf.mxu0
        %1478 = vmatprep.mubr.bf16.mxu0 %v867
        %1479 = vmatmul.mubr.bf16.gmra.mxu0 %v866
        %v1480 = vpop.f32.mrf.mxu0
        %v1481 = vadd.f32 %v1384, %v1480
        %v1482 = vpop.f32.mrf.mxu0
        %v1483 = vpop.f32.mrf.mxu0
        %v1484 = vadd.f32 %v1387, %v1483
        %v1485 = vpop.f32.mrf.mxu0
        %1486 = vmatprep.mubr.bf16.mxu0 %v872
        %1487 = vmatmul.mubr.bf16.gmra.mxu0 %v871
        %v1488 = vpop.f32.mrf.mxu0
        %v1489 = vadd.f32 %v1392, %v1488
        %v1490 = vpop.f32.mrf.mxu0
        %v1491 = vpop.f32.mrf.mxu0
        %v1492 = vadd.f32 %v1395, %v1491
        %v1493 = vpop.f32.mrf.mxu0
        %1494 = vmatprep.mubr.bf16.mxu0 %v877
        %1495 = vmatmul.mubr.bf16.gmra.mxu0 %v876
        %v1496 = vpop.f32.mrf.mxu0
        %v1497 = vadd.f32 %v1400, %v1496
        %v1498 = vpop.f32.mrf.mxu0
        %v1499 = vpop.f32.mrf.mxu0
        %v1500 = vadd.f32 %v1403, %v1499
        %v1501 = vpop.f32.mrf.mxu0
        %1502 = vmatprep.mubr.bf16.mxu0 %v882
        %1503 = vmatmul.mubr.bf16.gmra.mxu0 %v881
        %v1504 = vpop.f32.mrf.mxu0
        %v1505 = vadd.f32 %v1408, %v1504
        %v1506 = vpop.f32.mrf.mxu0
        %v1507 = vpop.f32.mrf.mxu0
        %v1508 = vadd.f32 %v1411, %v1507
        %v1509 = vpop.f32.mrf.mxu0
        %1510 = vdwg.mxu0
        %1511 = vmatprep.subr.bf16.mxu0 0
        %1512 = vmatpush1.bf16.msra.mxu0 %v1276
        %1513 = vmatprep.subr.bf16.mxu0 0
        %1514 = vmatpush1.bf16.msra.mxu0 %v1275
        %1515 = vmatprep.subr.bf16.mxu0 0
        %1516 = vmatpush1.bf16.msra.mxu0 %v1274
        %1517 = vmatprep.subr.bf16.mxu0 0
        %1518 = vmatpush1.bf16.msra.mxu0 %v1273
        %1519 = vmatprep.subr.bf16.mxu0 0
        %1520 = vmatpush1.bf16.msra.mxu0 %v1272
        %1521 = vmatprep.subr.bf16.mxu0 0
        %1522 = vmatpush1.bf16.msra.mxu0 %v1271
        %1523 = vmatprep.subr.bf16.mxu0 0
        %1524 = vmatpush1.bf16.msra.mxu0 %v1270
        %1525 = vmatprep.subr.bf16.mxu0 0
        %1526 = vmatpush1.bf16.msra.mxu0 %v1269
        %1527 = vmatprep.subr.bf16.mxu0 0
        %1528 = vmatpush2.bf16.msra.mxu0 0
        %1529 = vmatprep.subr.bf16.mxu0 0
        %1530 = vmatpush2.bf16.msra.mxu0 0
        %1531 = vmatprep.subr.bf16.mxu0 0
        %1532 = vmatpush2.bf16.msra.mxu0 0
        %1533 = vmatprep.subr.bf16.mxu0 0
        %1534 = vmatpush2.bf16.msra.mxu0 0
        %1535 = vmatprep.subr.bf16.mxu0 0
        %1536 = vmatpush2.bf16.msra.mxu0 0
        %1537 = vmatprep.subr.bf16.mxu0 0
        %1538 = vmatpush2.bf16.msra.mxu0 0
        %1539 = vmatprep.subr.bf16.mxu0 0
        %1540 = vmatpush2.bf16.msra.mxu0 0
        %1541 = vmatprep.subr.bf16.mxu0 0
        %1542 = vmatpush2.bf16.msra.mxu0 0
        %1543 = vmatprep.mubr.bf16.mxu0 0
        %1544 = vmatmul.mubr.bf16.gmra.mxu0 %v848
        %v1545 = vpop.f32.mrf.mxu0
        %v1546 = vadd.f32 %v1449, %v1545
        %v1547 = vpop.f32.mrf.mxu0
        %v1548 = vpop.f32.mrf.mxu0
        %v1549 = vadd.f32 %v1452, %v1548
        %v1550 = vpop.f32.mrf.mxu0
        %1551 = vmatprep.mubr.bf16.mxu0 0
        %1552 = vmatmul.mubr.bf16.gmra.mxu0 %v853
        %v1553 = vpop.f32.mrf.mxu0
        %v1554 = vadd.f32 %v1457, %v1553
        %v1555 = vpop.f32.mrf.mxu0
        %v1556 = vpop.f32.mrf.mxu0
        %v1557 = vadd.f32 %v1460, %v1556
        %v1558 = vpop.f32.mrf.mxu0
        %1559 = vmatprep.mubr.bf16.mxu0 0
        %1560 = vmatmul.mubr.bf16.gmra.mxu0 %v858
        %v1561 = vpop.f32.mrf.mxu0
        %v1562 = vadd.f32 %v1465, %v1561
        %v1563 = vpop.f32.mrf.mxu0
        %v1564 = vpop.f32.mrf.mxu0
        %v1565 = vadd.f32 %v1468, %v1564
        %v1566 = vpop.f32.mrf.mxu0
        %1567 = vmatprep.mubr.bf16.mxu0 0
        %1568 = vmatmul.mubr.bf16.gmra.mxu0 %v863
        %v1569 = vpop.f32.mrf.mxu0
        %v1570 = vadd.f32 %v1473, %v1569
        %v1571 = vpop.f32.mrf.mxu0
        %v1572 = vpop.f32.mrf.mxu0
        %v1573 = vadd.f32 %v1476, %v1572
        %v1574 = vpop.f32.mrf.mxu0
        %1575 = vmatprep.mubr.bf16.mxu0 0
        %1576 = vmatmul.mubr.bf16.gmra.mxu0 %v868
        %v1577 = vpop.f32.mrf.mxu0
        %v1578 = vadd.f32 %v1481, %v1577
        %v1579 = vpop.f32.mrf.mxu0
        %v1580 = vpop.f32.mrf.mxu0
        %v1581 = vadd.f32 %v1484, %v1580
        %v1582 = vpop.f32.mrf.mxu0
        %1583 = vmatprep.mubr.bf16.mxu0 0
        %1584 = vmatmul.mubr.bf16.gmra.mxu0 %v873
        %v1585 = vpop.f32.mrf.mxu0
        %v1586 = vadd.f32 %v1489, %v1585
        %v1587 = vpop.f32.mrf.mxu0
        %v1588 = vpop.f32.mrf.mxu0
        %v1589 = vadd.f32 %v1492, %v1588
        %v1590 = vpop.f32.mrf.mxu0
        %1591 = vmatprep.mubr.bf16.mxu0 0
        %1592 = vmatmul.mubr.bf16.gmra.mxu0 %v878
        %v1593 = vpop.f32.mrf.mxu0
        %v1594 = vadd.f32 %v1497, %v1593
        %v1595 = vpop.f32.mrf.mxu0
        %v1596 = vpop.f32.mrf.mxu0
        %v1597 = vadd.f32 %v1500, %v1596
        %v1598 = vpop.f32.mrf.mxu0
        %1599 = vmatprep.mubr.bf16.mxu0 0
        %1600 = vmatmul.mubr.bf16.gmra.mxu0 %v883
        %v1601 = vpop.f32.mrf.mxu0
        %v1602 = vadd.f32 %v1505, %v1601
        %v1603 = vpop.f32.mrf.mxu0
        %v1604 = vpop.f32.mrf.mxu0
        %v1605 = vadd.f32 %v1508, %v1604
        %v1606 = vpop.f32.mrf.mxu0
        %1607 = vdwg.mxu0
        %v1608 = vld [vmem:[%s5] sm:$0x1]
        %v1610 = vlaneseq
        %v1611 = vshrl.u32 %v1610, 7
        %v1612 = vsub.s32 0, %v1611
        %v1613 = vrot.slane %v1608, %v1612
        %v1615 = vadd.f32 %v1546, %v1613
        %v1616 = vadd.f32 %v1549, %v1613
        %v1617 = vadd.f32 %v1554, %v1613
        %v1618 = vadd.f32 %v1557, %v1613
        %v1619 = vadd.f32 %v1562, %v1613
        %v1620 = vadd.f32 %v1565, %v1613
        %v1621 = vadd.f32 %v1570, %v1613
        %v1622 = vadd.f32 %v1573, %v1613
        %v1623 = vadd.f32 %v1578, %v1613
        %v1624 = vadd.f32 %v1581, %v1613
        %v1625 = vadd.f32 %v1586, %v1613
        %v1626 = vadd.f32 %v1589, %v1613
        %v1627 = vadd.f32 %v1594, %v1613
        %v1628 = vadd.f32 %v1597, %v1613
        %v1629 = vadd.f32 %v1602, %v1613
        %v1630 = vadd.f32 %v1605, %v1613
        %1631 = vst [vmem:[%s260] sm:$0xff] %v1615
        %1632 = vst [vmem:[%s260 + $0x8] sm:$0xff] %v1616
        %1633 = vst [vmem:[%s260 + $0x10] sm:$0xff] %v1617
        %1634 = vst [vmem:[%s260 + $0x18] sm:$0xff] %v1618
        %1635 = vst [vmem:[%s260 + $0x20] sm:$0xff] %v1619
        %1636 = vst [vmem:[%s260 + $0x28] sm:$0xff] %v1620
        %1637 = vst [vmem:[%s260 + $0x30] sm:$0xff] %v1621
        %1638 = vst [vmem:[%s260 + $0x38] sm:$0xff] %v1622
        %1639 = vst [vmem:[%s260 + $0x40] sm:$0xff] %v1623
        %1640 = vst [vmem:[%s260 + $0x48] sm:$0xff] %v1624
        %1641 = vst [vmem:[%s260 + $0x50] sm:$0xff] %v1625
        %1642 = vst [vmem:[%s260 + $0x58] sm:$0xff] %v1626
        %1643 = vst [vmem:[%s260 + $0x60] sm:$0xff] %v1627
        %1644 = vst [vmem:[%s260 + $0x68] sm:$0xff] %v1628
        %1645 = vst [vmem:[%s260 + $0x70] sm:$0xff] %v1629
        %1646 = vst [vmem:[%s260 + $0x78] sm:$0xff] %v1630
        %s1647 = sand.u32 %s160, 1
        %s1648 = scalar_lea.sflag [#allocation4], %s1647
        %s1649 = sand.u32 %s160, 1
        %s1650 = smul.addr %s1649, 128
        %s1651 = scalar_lea.vmem [#allocation5], %s1650
        // Predicated region
        $region49: #{tpu_custom_call.1} parent=43 // pred_check
          %p1652 = pneg %p170
        $region50: #{tpu_custom_call.1} parent=43 // pred_check_branch
          %1654 = sbr.rel (%p1652) target = $region52
        $region51: #{tpu_custom_call.1} parent=43 // pred_region
          %s1655 = smul.u32 16, %s21
          %s1657 = ssub.s32 2048, 2048
          %1658 = vsyncadd %s1648, %s1657
          %s1659 = smul.addr %s1655, 128
          %s1660 = scalar_lea.hbm %s6, %s1659
          %s1661 = sshll.u32 %s1651, 4
          %s1662 = int_to_ptr.vmem [resolvable:$true] %s1661
          %1667 = dma.vmem_to_hbm [thread:$0]  %s1662, 2048, %s1660, %s1648, 128, 128, 8
        $region52: #{tpu_custom_call.1} parent=43 // pred_fallthru
          _
      $region44: #{tpu_custom_call.1} parent=5 // pred_fallthru
        _
      %p1668 = scmp.le.s32.totalorder 2, %s16
      // Predicated region
      $region53: #{tpu_custom_call.1} parent=5 // pred_check
        %p1669 = pneg %p1668
      $region54: #{tpu_custom_call.1} parent=5 // pred_check_branch
        %1671 = sbr.rel (%p1669) target = $region56
      $region55: #{tpu_custom_call.1} parent=5 // pred_region
        %s1672 = ssub.s32 %s16, 2
        // Predicated region
        $region57: #{tpu_custom_call.1} parent=55 // pred_check
          %p1673 = pneg %p176
        $region58: #{tpu_custom_call.1} parent=55 // pred_check_branch
          %1675 = sbr.rel (%p1673) target = $region60
        $region59: #{tpu_custom_call.1} parent=55 // pred_region
          %s1676 = sand.u32 %s161, 1
          %s1677 = scalar_lea.sflag [#allocation4], %s1676
          %s1678 = sand.u32 %s161, 1
          %s1679 = smul.addr %s1678, 128
          %s1680 = scalar_lea.vmem [#allocation5], %s1679
          %1681 = dma.done %s1677, 2048
        $region60: #{tpu_custom_call.1} parent=55 // pred_fallthru
          _
      $region56: #{tpu_custom_call.1} parent=5 // pred_fallthru
        _
    $region6: #{tpu_custom_call.1} parent=1 // loop_footer
      %s20 = sadd.s32 1, %s16
    $region7: #{tpu_custom_call.1} parent=1 // loop_footer_branch
      %15 = sbr.rel target = $region3
    $region8: #{tpu_custom_call.1} parent=1 // loop_exit
      _
    %1682 = vsyncpa [#allocation3], 1
    %s1683 = scalar_lea.sflag [#allocation3], 1
    %1684 = vsyncpa %s1683, 1
    %1685 = vsyncpa [#allocation4], 1
    %s1686 = scalar_lea.sflag [#allocation4], 1
    %1687 = vsyncpa %s1686, 1

</llo_original>
